<compile_context>
chip_gen: v5e
topology: v5e:2x2
jax: 0.10.0
libtpu: 0.0.40
codegen_flags: <defaults>
</compile_context>

<pallas_src>
import jax
import jax.numpy as jnp
from jax.experimental import pallas as pl
from jax.experimental.pallas import tpu as pltpu


def make_kernel(B, S, I, H, L):
    G = 4 * H

    def gates_to_hc(g, c_prev):
        # PyTorch gate order: i, f, g, o.  i and f are adjacent sigmoids -> one EUP pass.
        sif = jax.nn.sigmoid(g[:, :2 * H])
        ig = sif[:, :H]
        fg = sif[:, H:]
        gg = jnp.tanh(g[:, 2 * H:3 * H])
        og = jax.nn.sigmoid(g[:, 3 * H:])
        c_new = fg * c_prev + ig * gg
        h_new = og * jnp.tanh(c_new)
        return h_new, c_new

    def kernel(inp_ref, k_ref, w0_ref, b0_ref, whh0_ref, wcat_ref, brest_ref,
               fc1w_ref, fc1b_ref, fc2w_ref, fc2b_ref, out_ref):
        # inp_ref : [S*B, K0p]      time-major flattened LSTM input (zero padded K dim)
        # k_ref   : [B, 1]          per-sample k value
        # w0_ref  : [K0p, 4H]       layer-0 W_ih^T (zero padded rows)
        # b0_ref  : [1, 4H]         layer-0 b_ih + b_hh
        # whh0_ref: [H, 4H]         layer-0 W_hh^T
        # wcat_ref: [max(L-1,1), 2H, 4H]   fused [W_ih^T ; W_hh^T] for layers 1..L-1
        # brest_ref:[max(L-1,1), 1, 4H]    b_ih + b_hh for layers 1..L-1
        # fc1w_ref: [S*H, S*I]      block-diagonal fc1 weight (fc1_w^T on the diagonal)
        # fc1b_ref: [1, S*I]        fc1 bias tiled S times
        # fc2w_ref: [S*I + 1, S*I]  fc2 weight, transposed
        # fc2b_ref: [1, S*I]
        # out_ref : [B, S*I]

        # ---- (1) layer-0 input contribution for ALL steps: one MXU op (M = S*B).
        x0 = jnp.dot(inp_ref[...], w0_ref[...], preferred_element_type=jnp.float32)
        x0 = x0 + b0_ref[...]                                   # [S*B, 4H], bias folded once

        # ---- hoist weights / broadcast biases out of the (unrolled) time loop.
        whh0 = whh0_ref[...]                                    # [H, 4H]
        wcat = [wcat_ref[l] for l in range(L - 1)]              # each [2H, 4H]
        bias_b = [jnp.broadcast_to(brest_ref[l], (B, G)) for l in range(L - 1)]

        h = [jnp.zeros((B, H), jnp.float32) for _ in range(L)]
        c = [jnp.zeros((B, H), jnp.float32) for _ in range(L)]
        h_top = []

        for t in range(S):
            # layer 0: single matmul per step (input part + bias precomputed above).
            g = x0[t * B:(t + 1) * B, :] + jnp.dot(
                h[0], whh0, preferred_element_type=jnp.float32)
            h[0], c[0] = gates_to_hc(g, c[0])
            # layers 1..L-1: one fused matmul per cell.
            for l in range(1, L):
                cat = jnp.concatenate([h[l - 1], h[l]], axis=1)     # [B, 2H]
                g = jnp.dot(cat, wcat[l - 1],
                            preferred_element_type=jnp.float32) + bias_b[l - 1]
                h[l], c[l] = gates_to_hc(g, c[l])
            h_top.append(h[L - 1])

        # ---- (2) fc1 for all time steps in ONE lane-dense matmul.
        h_flat = jnp.concatenate(h_top, axis=1)                 # [B, S*H]
        y = jnp.dot(h_flat, fc1w_ref[...], preferred_element_type=jnp.float32)
        y = jnp.maximum(y + fc1b_ref[...], 0.0)                 # [B, S*I]

        # ---- (3) fc2 with k folded in as the last input column (single matmul).
        yk = jnp.concatenate([y, k_ref[...]], axis=1)           # [B, S*I + 1]
        out = jnp.dot(yk, fc2w_ref[...], preferred_element_type=jnp.float32)
        out_ref[...] = out + fc2b_ref[...]

    return kernel


def lstm_ffout_forward(x, params, *, input_size, hidden_size, num_layers, seq_steps):
    """Pallas implementation of LSTMFFout.forward.  x: [B, 1 + seq_steps*input_size]."""
    I, H, L, S = input_size, hidden_size, num_layers, seq_steps
    B = x.shape[0]
    G = 4 * H

    x = x.astype(jnp.float32)
    k = x[:, 0:1]                                              # [B, 1]
    xs = x[:, 1:].reshape(B, S, I)                             # [B, S, I]
    inp = jnp.concatenate(
        [xs, jnp.broadcast_to(k[:, None, :], (B, S, 1))], axis=2)   # [B, S, I+1]
    # time-major flatten (row = t*B + b) so per-step slices in-kernel are contiguous.
    K0 = I + 1
    K0p = ((K0 + 7) // 8) * 8
    inp_tm = jnp.transpose(inp, (1, 0, 2)).reshape(S * B, K0)
    inp_tm = jnp.pad(inp_tm, ((0, 0), (0, K0p - K0)))          # [S*B, K0p]

    # layer-0 weights (pre-transposed, zero padded rows), summed bias.
    w0 = jnp.pad(params["w_ih_0"].T, ((0, K0p - K0), (0, 0)))  # [K0p, 4H]
    b0 = (params["b_ih_0"] + params["b_hh_0"]).reshape(1, G)
    whh0 = params["w_hh_0"].T                                  # [H, 4H]

    # layers >= 1: fused [W_ih^T ; W_hh^T] stacks + summed biases.
    if L > 1:
        wcat = jnp.stack(
            [jnp.concatenate([params[f"w_ih_{l}"].T, params[f"w_hh_{l}"].T], axis=0)
             for l in range(1, L)], axis=0)                    # [L-1, 2H, 4H]
        brest = jnp.stack(
            [params[f"b_ih_{l}"] + params[f"b_hh_{l}"] for l in range(1, L)],
            axis=0)[:, None, :]                                # [L-1, 1, 4H]
    else:                                                      # dummies, never read
        wcat = jnp.zeros((1, 2 * H, G), jnp.float32)
        brest = jnp.zeros((1, 1, G), jnp.float32)

    # fc1 as a block-diagonal weight so one matmul yields the lane-dense [B, S*I] slab.
    fc1w_t = params["fc1_w"].T                                 # [H, I]
    fc1w_bd = jnp.kron(jnp.eye(S, dtype=fc1w_t.dtype), fc1w_t) # [S*H, S*I]
    fc1b_tiled = jnp.tile(params["fc1_b"], S).reshape(1, S * I)

    fc2w_t = params["fc2_w"].T                                 # [S*I+1, S*I]
    fc2b = params["fc2_b"].reshape(1, S * I)

    kernel = make_kernel(B, S, I, H, L)
    vmem = pl.BlockSpec(memory_space=pltpu.MemorySpace.VMEM)
    out = pl.pallas_call(
        kernel,
        out_shape=jax.ShapeDtypeStruct((B, S * I), jnp.float32),
        in_specs=[vmem] * 11,
        out_specs=vmem,
    )(inp_tm, k, w0, b0, whh0, wcat, brest, fc1w_bd, fc1b_tiled, fc2w_t, fc2b)
    return out


def lstm_ffout_reference(x, params, *, input_size, hidden_size, num_layers, seq_steps):
    """Pure-JAX reference (mirrors the PyTorch module) for verification."""
    I, H, L, S = input_size, hidden_size, num_layers, seq_steps
    B = x.shape[0]
    x = x.astype(jnp.float32)
    k = x[:, 0:1]
    xs = x[:, 1:].reshape(B, S, I)
    inp = jnp.concatenate([xs, jnp.broadcast_to(k[:, None, :], (B, S, 1))], axis=2)

    def cell(x_t, h, c, w_ih, w_hh, b_ih, b_hh):
        g = x_t @ w_ih.T + h @ w_hh.T + b_ih + b_hh
        i = jax.nn.sigmoid(g[:, 0 * H:1 * H])
        f = jax.nn.sigmoid(g[:, 1 * H:2 * H])
        gg = jnp.tanh(g[:, 2 * H:3 * H])
        o = jax.nn.sigmoid(g[:, 3 * H:4 * H])
        c = f * c + i * gg
        h = o * jnp.tanh(c)
        return h, c

    hs = [jnp.zeros((B, H)) for _ in range(L)]
    cs = [jnp.zeros((B, H)) for _ in range(L)]
    tops = []
    for t in range(S):
        layer_in = inp[:, t, :]
        for l in range(L):
            hs[l], cs[l] = cell(layer_in, hs[l], cs[l],
                                params[f"w_ih_{l}"], params[f"w_hh_{l}"],
                                params[f"b_ih_{l}"], params[f"b_hh_{l}"])
            layer_in = hs[l]
        tops.append(hs[L - 1])
    out = jnp.stack(tops, axis=1).reshape(B * S, H)
    out = jax.nn.relu((out @ params["fc1_w"].T + params["fc1_b"]).reshape(B, S * I))
    out = jnp.concatenate([out, k], axis=1)
    return out @ params["fc2_w"].T + params["fc2_b"]


def init_params(key, *, input_size, hidden_size, num_layers, seq_steps):
    I, H, L, S = input_size, hidden_size, num_layers, seq_steps
    s = 1.0 / jnp.sqrt(H)
    params = {}
    keys = jax.random.split(key, 4 * L + 4)
    ki = 0
    for l in range(L):
        in_dim = (I + 1) if l == 0 else H
        params[f"w_ih_{l}"] = jax.random.uniform(keys[ki], (4 * H, in_dim), jnp.float32, -s, s); ki += 1
        params[f"w_hh_{l}"] = jax.random.uniform(keys[ki], (4 * H, H), jnp.float32, -s, s); ki += 1
        params[f"b_ih_{l}"] = jax.random.uniform(keys[ki], (4 * H,), jnp.float32, -s, s); ki += 1
        params[f"b_hh_{l}"] = jax.random.uniform(keys[ki], (4 * H,), jnp.float32, -s, s); ki += 1
    params["fc1_w"] = jax.random.uniform(keys[ki], (I, H), jnp.float32, -s, s); ki += 1
    params["fc1_b"] = jax.random.uniform(keys[ki], (I,), jnp.float32, -s, s); ki += 1
    s2 = 1.0 / jnp.sqrt(S * I + 1)
    params["fc2_w"] = jax.random.uniform(keys[ki], (S * I, S * I + 1), jnp.float32, -s2, s2); ki += 1
    params["fc2_b"] = jax.random.uniform(keys[ki], (S * I,), jnp.float32, -s2, s2); ki += 1
    return params


if __name__ == "__main__":
    input_size, hidden_size, num_layers, seq_steps, batch = 4, 32, 2, 8, 2
    cfg = dict(input_size=input_size, hidden_size=hidden_size,
               num_layers=num_layers, seq_steps=seq_steps)

    root = jax.random.PRNGKey(0)
    kp, kx = jax.random.split(root)
    params = init_params(kp, **cfg)
    # x: [batch, 1 + seq_steps * input_size]  (col 0 is the per-sample k value)
    x = jax.random.normal(kx, (batch, 1 + seq_steps * input_size), jnp.float32)

    out = lstm_ffout_forward(x, params, **cfg)
    out = jax.block_until_ready(out)

    ref = lstm_ffout_reference(x, params, **cfg)
    assert out.shape == (batch, seq_steps * input_size)
    assert jnp.allclose(out, ref, atol=1e-4, rtol=1e-4), "mismatch vs pure-JAX reference"

    print("KERNEL_OK")
</pallas_src>

<mosaic_0001>
module attributes {stable_mosaic.version = 11 : i64} {
  func.func @kernel(%arg0: memref<16x8xf32, #tpu.memory_space<vmem>>, %arg1: memref<2x1xf32, #tpu.memory_space<vmem>>, %arg2: memref<8x128xf32, #tpu.memory_space<vmem>>, %arg3: memref<1x128xf32, #tpu.memory_space<vmem>>, %arg4: memref<32x128xf32, #tpu.memory_space<vmem>>, %arg5: memref<1x64x128xf32, #tpu.memory_space<vmem>>, %arg6: memref<1x1x128xf32, #tpu.memory_space<vmem>>, %arg7: memref<256x32xf32, #tpu.memory_space<vmem>>, %arg8: memref<1x32xf32, #tpu.memory_space<vmem>>, %arg9: memref<33x32xf32, #tpu.memory_space<vmem>>, %arg10: memref<1x32xf32, #tpu.memory_space<vmem>>, %arg11: memref<2x32xf32, #tpu.memory_space<vmem>>) attributes {dimension_semantics = [], scalar_prefetch = 0 : i64, scratch_operands = 0 : i64, tpu.core_type = #tpu.core_type<tc>} {
    %c0 = arith.constant 0 : index
    %c0_0 = arith.constant 0 : index
    %0 = vector.load %arg0[%c0, %c0_0] : memref<16x8xf32, #tpu.memory_space<vmem>>, vector<16x8xf32>
    %c0_1 = arith.constant 0 : index
    %c0_2 = arith.constant 0 : index
    %1 = vector.load %arg2[%c0_1, %c0_2] : memref<8x128xf32, #tpu.memory_space<vmem>>, vector<8x128xf32>
    %cst = arith.constant dense<0.000000e+00> : vector<16x128xf32>
    %2 = tpu.matmul %0, %1, %cst {dimension_numbers = #tpu.dot_dimension_numbers<[1], [0], [0], [1], [0, 0, 1, 1], [], []>} : vector<16x8xf32>, vector<8x128xf32>, vector<16x128xf32> -> vector<16x128xf32>
    %c0_3 = arith.constant 0 : index
    %c0_4 = arith.constant 0 : index
    %3 = vector.load %arg3[%c0_3, %c0_4] : memref<1x128xf32, #tpu.memory_space<vmem>>, vector<1x128xf32>
    %4 = vector.broadcast %3 : vector<1x128xf32> to vector<16x128xf32>
    %5 = arith.addf %2, %4 : vector<16x128xf32>
    %c0_5 = arith.constant 0 : index
    %c0_6 = arith.constant 0 : index
    %6 = vector.load %arg4[%c0_5, %c0_6] : memref<32x128xf32, #tpu.memory_space<vmem>>, vector<32x128xf32>
    %c0_7 = arith.constant 0 : index
    %c0_8 = arith.constant 0 : index
    %c0_9 = arith.constant 0 : index
    %7 = vector.load %arg5[%c0_7, %c0_8, %c0_9] : memref<1x64x128xf32, #tpu.memory_space<vmem>>, vector<1x64x128xf32>
    %8 = vector.shape_cast %7 : vector<1x64x128xf32> to vector<64x128xf32>
    %c0_10 = arith.constant 0 : index
    %c0_11 = arith.constant 0 : index
    %c0_12 = arith.constant 0 : index
    %9 = vector.load %arg6[%c0_10, %c0_11, %c0_12] : memref<1x1x128xf32, #tpu.memory_space<vmem>>, vector<1x1x128xf32>
    %10 = vector.shape_cast %9 : vector<1x1x128xf32> to vector<1x128xf32>
    %11 = vector.shape_cast %10 : vector<1x128xf32> to vector<1x128xf32>
    %12 = vector.broadcast %11 : vector<1x128xf32> to vector<2x128xf32>
    %cst_13 = arith.constant 0.000000e+00 : f32
    %13 = vector.broadcast %cst_13 : f32 to vector<2x32xf32>
    %cst_14 = arith.constant 0.000000e+00 : f32
    %14 = vector.broadcast %cst_14 : f32 to vector<2x32xf32>
    %cst_15 = arith.constant 0.000000e+00 : f32
    %15 = vector.broadcast %cst_15 : f32 to vector<2x32xf32>
    %cst_16 = arith.constant 0.000000e+00 : f32
    %16 = vector.broadcast %cst_16 : f32 to vector<2x32xf32>
    %17 = vector.extract_strided_slice %5 {offsets = [0, 0], sizes = [2, 128], strides = [1, 1]} : vector<16x128xf32> to vector<2x128xf32>
    %cst_17 = arith.constant dense<0.000000e+00> : vector<2x128xf32>
    %18 = tpu.matmul %13, %6, %cst_17 {dimension_numbers = #tpu.dot_dimension_numbers<[1], [0], [0], [1], [0, 0, 1, 1], [], []>} : vector<2x32xf32>, vector<32x128xf32>, vector<2x128xf32> -> vector<2x128xf32>
    %19 = arith.addf %17, %18 : vector<2x128xf32>
    %20 = vector.extract_strided_slice %19 {offsets = [0, 0], sizes = [2, 64], strides = [1, 1]} : vector<2x128xf32> to vector<2x64xf32>
    %21 = arith.negf %20 : vector<2x64xf32>
    %22 = math.exp %21 : vector<2x64xf32>
    %cst_18 = arith.constant 1.000000e+00 : f32
    %23 = vector.broadcast %cst_18 : f32 to vector<2x64xf32>
    %24 = arith.addf %23, %22 : vector<2x64xf32>
    %25 = arith.divf %23, %24 : vector<2x64xf32>
    %26 = vector.extract_strided_slice %25 {offsets = [0, 0], sizes = [2, 32], strides = [1, 1]} : vector<2x64xf32> to vector<2x32xf32>
    %27 = vector.extract_strided_slice %25 {offsets = [0, 32], sizes = [2, 32], strides = [1, 1]} : vector<2x64xf32> to vector<2x32xf32>
    %28 = vector.extract_strided_slice %19 {offsets = [0, 64], sizes = [2, 32], strides = [1, 1]} : vector<2x128xf32> to vector<2x32xf32>
    %29 = math.tanh %28 : vector<2x32xf32>
    %30 = vector.extract_strided_slice %19 {offsets = [0, 96], sizes = [2, 32], strides = [1, 1]} : vector<2x128xf32> to vector<2x32xf32>
    %31 = arith.negf %30 : vector<2x32xf32>
    %32 = math.exp %31 : vector<2x32xf32>
    %cst_19 = arith.constant 1.000000e+00 : f32
    %33 = vector.broadcast %cst_19 : f32 to vector<2x32xf32>
    %34 = arith.addf %33, %32 : vector<2x32xf32>
    %35 = arith.divf %33, %34 : vector<2x32xf32>
    %36 = arith.mulf %27, %15 : vector<2x32xf32>
    %37 = arith.mulf %26, %29 : vector<2x32xf32>
    %38 = arith.addf %36, %37 : vector<2x32xf32>
    %39 = math.tanh %38 : vector<2x32xf32>
    %40 = arith.mulf %35, %39 : vector<2x32xf32>
    %41 = tpu.concatenate %40, %14 in 1 : vector<2x32xf32>, vector<2x32xf32> -> vector<2x64xf32>
    %cst_20 = arith.constant dense<0.000000e+00> : vector<2x128xf32>
    %42 = tpu.matmul %41, %8, %cst_20 {dimension_numbers = #tpu.dot_dimension_numbers<[1], [0], [0], [1], [0, 0, 1, 1], [], []>} : vector<2x64xf32>, vector<64x128xf32>, vector<2x128xf32> -> vector<2x128xf32>
    %43 = arith.addf %42, %12 : vector<2x128xf32>
    %44 = vector.extract_strided_slice %43 {offsets = [0, 0], sizes = [2, 64], strides = [1, 1]} : vector<2x128xf32> to vector<2x64xf32>
    %45 = arith.negf %44 : vector<2x64xf32>
    %46 = math.exp %45 : vector<2x64xf32>
    %cst_21 = arith.constant 1.000000e+00 : f32
    %47 = vector.broadcast %cst_21 : f32 to vector<2x64xf32>
    %48 = arith.addf %47, %46 : vector<2x64xf32>
    %49 = arith.divf %47, %48 : vector<2x64xf32>
    %50 = vector.extract_strided_slice %49 {offsets = [0, 0], sizes = [2, 32], strides = [1, 1]} : vector<2x64xf32> to vector<2x32xf32>
    %51 = vector.extract_strided_slice %49 {offsets = [0, 32], sizes = [2, 32], strides = [1, 1]} : vector<2x64xf32> to vector<2x32xf32>
    %52 = vector.extract_strided_slice %43 {offsets = [0, 64], sizes = [2, 32], strides = [1, 1]} : vector<2x128xf32> to vector<2x32xf32>
    %53 = math.tanh %52 : vector<2x32xf32>
    %54 = vector.extract_strided_slice %43 {offsets = [0, 96], sizes = [2, 32], strides = [1, 1]} : vector<2x128xf32> to vector<2x32xf32>
    %55 = arith.negf %54 : vector<2x32xf32>
    %56 = math.exp %55 : vector<2x32xf32>
    %cst_22 = arith.constant 1.000000e+00 : f32
    %57 = vector.broadcast %cst_22 : f32 to vector<2x32xf32>
    %58 = arith.addf %57, %56 : vector<2x32xf32>
    %59 = arith.divf %57, %58 : vector<2x32xf32>
    %60 = arith.mulf %51, %16 : vector<2x32xf32>
    %61 = arith.mulf %50, %53 : vector<2x32xf32>
    %62 = arith.addf %60, %61 : vector<2x32xf32>
    %63 = math.tanh %62 : vector<2x32xf32>
    %64 = arith.mulf %59, %63 : vector<2x32xf32>
    %65 = vector.extract_strided_slice %5 {offsets = [2, 0], sizes = [2, 128], strides = [1, 1]} : vector<16x128xf32> to vector<2x128xf32>
    %cst_23 = arith.constant dense<0.000000e+00> : vector<2x128xf32>
    %66 = tpu.matmul %40, %6, %cst_23 {dimension_numbers = #tpu.dot_dimension_numbers<[1], [0], [0], [1], [0, 0, 1, 1], [], []>} : vector<2x32xf32>, vector<32x128xf32>, vector<2x128xf32> -> vector<2x128xf32>
    %67 = arith.addf %65, %66 : vector<2x128xf32>
    %68 = vector.extract_strided_slice %67 {offsets = [0, 0], sizes = [2, 64], strides = [1, 1]} : vector<2x128xf32> to vector<2x64xf32>
    %69 = arith.negf %68 : vector<2x64xf32>
    %70 = math.exp %69 : vector<2x64xf32>
    %cst_24 = arith.constant 1.000000e+00 : f32
    %71 = vector.broadcast %cst_24 : f32 to vector<2x64xf32>
    %72 = arith.addf %71, %70 : vector<2x64xf32>
    %73 = arith.divf %71, %72 : vector<2x64xf32>
    %74 = vector.extract_strided_slice %73 {offsets = [0, 0], sizes = [2, 32], strides = [1, 1]} : vector<2x64xf32> to vector<2x32xf32>
    %75 = vector.extract_strided_slice %73 {offsets = [0, 32], sizes = [2, 32], strides = [1, 1]} : vector<2x64xf32> to vector<2x32xf32>
    %76 = vector.extract_strided_slice %67 {offsets = [0, 64], sizes = [2, 32], strides = [1, 1]} : vector<2x128xf32> to vector<2x32xf32>
    %77 = math.tanh %76 : vector<2x32xf32>
    %78 = vector.extract_strided_slice %67 {offsets = [0, 96], sizes = [2, 32], strides = [1, 1]} : vector<2x128xf32> to vector<2x32xf32>
    %79 = arith.negf %78 : vector<2x32xf32>
    %80 = math.exp %79 : vector<2x32xf32>
    %cst_25 = arith.constant 1.000000e+00 : f32
    %81 = vector.broadcast %cst_25 : f32 to vector<2x32xf32>
    %82 = arith.addf %81, %80 : vector<2x32xf32>
    %83 = arith.divf %81, %82 : vector<2x32xf32>
    %84 = arith.mulf %75, %38 : vector<2x32xf32>
    %85 = arith.mulf %74, %77 : vector<2x32xf32>
    %86 = arith.addf %84, %85 : vector<2x32xf32>
    %87 = math.tanh %86 : vector<2x32xf32>
    %88 = arith.mulf %83, %87 : vector<2x32xf32>
    %89 = tpu.concatenate %88, %64 in 1 : vector<2x32xf32>, vector<2x32xf32> -> vector<2x64xf32>
    %cst_26 = arith.constant dense<0.000000e+00> : vector<2x128xf32>
    %90 = tpu.matmul %89, %8, %cst_26 {dimension_numbers = #tpu.dot_dimension_numbers<[1], [0], [0], [1], [0, 0, 1, 1], [], []>} : vector<2x64xf32>, vector<64x128xf32>, vector<2x128xf32> -> vector<2x128xf32>
    %91 = arith.addf %90, %12 : vector<2x128xf32>
    %92 = vector.extract_strided_slice %91 {offsets = [0, 0], sizes = [2, 64], strides = [1, 1]} : vector<2x128xf32> to vector<2x64xf32>
    %93 = arith.negf %92 : vector<2x64xf32>
    %94 = math.exp %93 : vector<2x64xf32>
    %cst_27 = arith.constant 1.000000e+00 : f32
    %95 = vector.broadcast %cst_27 : f32 to vector<2x64xf32>
    %96 = arith.addf %95, %94 : vector<2x64xf32>
    %97 = arith.divf %95, %96 : vector<2x64xf32>
    %98 = vector.extract_strided_slice %97 {offsets = [0, 0], sizes = [2, 32], strides = [1, 1]} : vector<2x64xf32> to vector<2x32xf32>
    %99 = vector.extract_strided_slice %97 {offsets = [0, 32], sizes = [2, 32], strides = [1, 1]} : vector<2x64xf32> to vector<2x32xf32>
    %100 = vector.extract_strided_slice %91 {offsets = [0, 64], sizes = [2, 32], strides = [1, 1]} : vector<2x128xf32> to vector<2x32xf32>
    %101 = math.tanh %100 : vector<2x32xf32>
    %102 = vector.extract_strided_slice %91 {offsets = [0, 96], sizes = [2, 32], strides = [1, 1]} : vector<2x128xf32> to vector<2x32xf32>
    %103 = arith.negf %102 : vector<2x32xf32>
    %104 = math.exp %103 : vector<2x32xf32>
    %cst_28 = arith.constant 1.000000e+00 : f32
    %105 = vector.broadcast %cst_28 : f32 to vector<2x32xf32>
    %106 = arith.addf %105, %104 : vector<2x32xf32>
    %107 = arith.divf %105, %106 : vector<2x32xf32>
    %108 = arith.mulf %99, %62 : vector<2x32xf32>
    %109 = arith.mulf %98, %101 : vector<2x32xf32>
    %110 = arith.addf %108, %109 : vector<2x32xf32>
    %111 = math.tanh %110 : vector<2x32xf32>
    %112 = arith.mulf %107, %111 : vector<2x32xf32>
    %113 = vector.extract_strided_slice %5 {offsets = [4, 0], sizes = [2, 128], strides = [1, 1]} : vector<16x128xf32> to vector<2x128xf32>
    %cst_29 = arith.constant dense<0.000000e+00> : vector<2x128xf32>
    %114 = tpu.matmul %88, %6, %cst_29 {dimension_numbers = #tpu.dot_dimension_numbers<[1], [0], [0], [1], [0, 0, 1, 1], [], []>} : vector<2x32xf32>, vector<32x128xf32>, vector<2x128xf32> -> vector<2x128xf32>
    %115 = arith.addf %113, %114 : vector<2x128xf32>
    %116 = vector.extract_strided_slice %115 {offsets = [0, 0], sizes = [2, 64], strides = [1, 1]} : vector<2x128xf32> to vector<2x64xf32>
    %117 = arith.negf %116 : vector<2x64xf32>
    %118 = math.exp %117 : vector<2x64xf32>
    %cst_30 = arith.constant 1.000000e+00 : f32
    %119 = vector.broadcast %cst_30 : f32 to vector<2x64xf32>
    %120 = arith.addf %119, %118 : vector<2x64xf32>
    %121 = arith.divf %119, %120 : vector<2x64xf32>
    %122 = vector.extract_strided_slice %121 {offsets = [0, 0], sizes = [2, 32], strides = [1, 1]} : vector<2x64xf32> to vector<2x32xf32>
    %123 = vector.extract_strided_slice %121 {offsets = [0, 32], sizes = [2, 32], strides = [1, 1]} : vector<2x64xf32> to vector<2x32xf32>
    %124 = vector.extract_strided_slice %115 {offsets = [0, 64], sizes = [2, 32], strides = [1, 1]} : vector<2x128xf32> to vector<2x32xf32>
    %125 = math.tanh %124 : vector<2x32xf32>
    %126 = vector.extract_strided_slice %115 {offsets = [0, 96], sizes = [2, 32], strides = [1, 1]} : vector<2x128xf32> to vector<2x32xf32>
    %127 = arith.negf %126 : vector<2x32xf32>
    %128 = math.exp %127 : vector<2x32xf32>
    %cst_31 = arith.constant 1.000000e+00 : f32
    %129 = vector.broadcast %cst_31 : f32 to vector<2x32xf32>
    %130 = arith.addf %129, %128 : vector<2x32xf32>
    %131 = arith.divf %129, %130 : vector<2x32xf32>
    %132 = arith.mulf %123, %86 : vector<2x32xf32>
    %133 = arith.mulf %122, %125 : vector<2x32xf32>
    %134 = arith.addf %132, %133 : vector<2x32xf32>
    %135 = math.tanh %134 : vector<2x32xf32>
    %136 = arith.mulf %131, %135 : vector<2x32xf32>
    %137 = tpu.concatenate %136, %112 in 1 : vector<2x32xf32>, vector<2x32xf32> -> vector<2x64xf32>
    %cst_32 = arith.constant dense<0.000000e+00> : vector<2x128xf32>
    %138 = tpu.matmul %137, %8, %cst_32 {dimension_numbers = #tpu.dot_dimension_numbers<[1], [0], [0], [1], [0, 0, 1, 1], [], []>} : vector<2x64xf32>, vector<64x128xf32>, vector<2x128xf32> -> vector<2x128xf32>
    %139 = arith.addf %138, %12 : vector<2x128xf32>
    %140 = vector.extract_strided_slice %139 {offsets = [0, 0], sizes = [2, 64], strides = [1, 1]} : vector<2x128xf32> to vector<2x64xf32>
    %141 = arith.negf %140 : vector<2x64xf32>
    %142 = math.exp %141 : vector<2x64xf32>
    %cst_33 = arith.constant 1.000000e+00 : f32
    %143 = vector.broadcast %cst_33 : f32 to vector<2x64xf32>
    %144 = arith.addf %143, %142 : vector<2x64xf32>
    %145 = arith.divf %143, %144 : vector<2x64xf32>
    %146 = vector.extract_strided_slice %145 {offsets = [0, 0], sizes = [2, 32], strides = [1, 1]} : vector<2x64xf32> to vector<2x32xf32>
    %147 = vector.extract_strided_slice %145 {offsets = [0, 32], sizes = [2, 32], strides = [1, 1]} : vector<2x64xf32> to vector<2x32xf32>
    %148 = vector.extract_strided_slice %139 {offsets = [0, 64], sizes = [2, 32], strides = [1, 1]} : vector<2x128xf32> to vector<2x32xf32>
    %149 = math.tanh %148 : vector<2x32xf32>
    %150 = vector.extract_strided_slice %139 {offsets = [0, 96], sizes = [2, 32], strides = [1, 1]} : vector<2x128xf32> to vector<2x32xf32>
    %151 = arith.negf %150 : vector<2x32xf32>
    %152 = math.exp %151 : vector<2x32xf32>
    %cst_34 = arith.constant 1.000000e+00 : f32
    %153 = vector.broadcast %cst_34 : f32 to vector<2x32xf32>
    %154 = arith.addf %153, %152 : vector<2x32xf32>
    %155 = arith.divf %153, %154 : vector<2x32xf32>
    %156 = arith.mulf %147, %110 : vector<2x32xf32>
    %157 = arith.mulf %146, %149 : vector<2x32xf32>
    %158 = arith.addf %156, %157 : vector<2x32xf32>
    %159 = math.tanh %158 : vector<2x32xf32>
    %160 = arith.mulf %155, %159 : vector<2x32xf32>
    %161 = vector.extract_strided_slice %5 {offsets = [6, 0], sizes = [2, 128], strides = [1, 1]} : vector<16x128xf32> to vector<2x128xf32>
    %cst_35 = arith.constant dense<0.000000e+00> : vector<2x128xf32>
    %162 = tpu.matmul %136, %6, %cst_35 {dimension_numbers = #tpu.dot_dimension_numbers<[1], [0], [0], [1], [0, 0, 1, 1], [], []>} : vector<2x32xf32>, vector<32x128xf32>, vector<2x128xf32> -> vector<2x128xf32>
    %163 = arith.addf %161, %162 : vector<2x128xf32>
    %164 = vector.extract_strided_slice %163 {offsets = [0, 0], sizes = [2, 64], strides = [1, 1]} : vector<2x128xf32> to vector<2x64xf32>
    %165 = arith.negf %164 : vector<2x64xf32>
    %166 = math.exp %165 : vector<2x64xf32>
    %cst_36 = arith.constant 1.000000e+00 : f32
    %167 = vector.broadcast %cst_36 : f32 to vector<2x64xf32>
    %168 = arith.addf %167, %166 : vector<2x64xf32>
    %169 = arith.divf %167, %168 : vector<2x64xf32>
    %170 = vector.extract_strided_slice %169 {offsets = [0, 0], sizes = [2, 32], strides = [1, 1]} : vector<2x64xf32> to vector<2x32xf32>
    %171 = vector.extract_strided_slice %169 {offsets = [0, 32], sizes = [2, 32], strides = [1, 1]} : vector<2x64xf32> to vector<2x32xf32>
    %172 = vector.extract_strided_slice %163 {offsets = [0, 64], sizes = [2, 32], strides = [1, 1]} : vector<2x128xf32> to vector<2x32xf32>
    %173 = math.tanh %172 : vector<2x32xf32>
    %174 = vector.extract_strided_slice %163 {offsets = [0, 96], sizes = [2, 32], strides = [1, 1]} : vector<2x128xf32> to vector<2x32xf32>
    %175 = arith.negf %174 : vector<2x32xf32>
    %176 = math.exp %175 : vector<2x32xf32>
    %cst_37 = arith.constant 1.000000e+00 : f32
    %177 = vector.broadcast %cst_37 : f32 to vector<2x32xf32>
    %178 = arith.addf %177, %176 : vector<2x32xf32>
    %179 = arith.divf %177, %178 : vector<2x32xf32>
    %180 = arith.mulf %171, %134 : vector<2x32xf32>
    %181 = arith.mulf %170, %173 : vector<2x32xf32>
    %182 = arith.addf %180, %181 : vector<2x32xf32>
    %183 = math.tanh %182 : vector<2x32xf32>
    %184 = arith.mulf %179, %183 : vector<2x32xf32>
    %185 = tpu.concatenate %184, %160 in 1 : vector<2x32xf32>, vector<2x32xf32> -> vector<2x64xf32>
    %cst_38 = arith.constant dense<0.000000e+00> : vector<2x128xf32>
    %186 = tpu.matmul %185, %8, %cst_38 {dimension_numbers = #tpu.dot_dimension_numbers<[1], [0], [0], [1], [0, 0, 1, 1], [], []>} : vector<2x64xf32>, vector<64x128xf32>, vector<2x128xf32> -> vector<2x128xf32>
    %187 = arith.addf %186, %12 : vector<2x128xf32>
    %188 = vector.extract_strided_slice %187 {offsets = [0, 0], sizes = [2, 64], strides = [1, 1]} : vector<2x128xf32> to vector<2x64xf32>
    %189 = arith.negf %188 : vector<2x64xf32>
    %190 = math.exp %189 : vector<2x64xf32>
    %cst_39 = arith.constant 1.000000e+00 : f32
    %191 = vector.broadcast %cst_39 : f32 to vector<2x64xf32>
    %192 = arith.addf %191, %190 : vector<2x64xf32>
    %193 = arith.divf %191, %192 : vector<2x64xf32>
    %194 = vector.extract_strided_slice %193 {offsets = [0, 0], sizes = [2, 32], strides = [1, 1]} : vector<2x64xf32> to vector<2x32xf32>
    %195 = vector.extract_strided_slice %193 {offsets = [0, 32], sizes = [2, 32], strides = [1, 1]} : vector<2x64xf32> to vector<2x32xf32>
    %196 = vector.extract_strided_slice %187 {offsets = [0, 64], sizes = [2, 32], strides = [1, 1]} : vector<2x128xf32> to vector<2x32xf32>
    %197 = math.tanh %196 : vector<2x32xf32>
    %198 = vector.extract_strided_slice %187 {offsets = [0, 96], sizes = [2, 32], strides = [1, 1]} : vector<2x128xf32> to vector<2x32xf32>
    %199 = arith.negf %198 : vector<2x32xf32>
    %200 = math.exp %199 : vector<2x32xf32>
    %cst_40 = arith.constant 1.000000e+00 : f32
    %201 = vector.broadcast %cst_40 : f32 to vector<2x32xf32>
    %202 = arith.addf %201, %200 : vector<2x32xf32>
    %203 = arith.divf %201, %202 : vector<2x32xf32>
    %204 = arith.mulf %195, %158 : vector<2x32xf32>
    %205 = arith.mulf %194, %197 : vector<2x32xf32>
    %206 = arith.addf %204, %205 : vector<2x32xf32>
    %207 = math.tanh %206 : vector<2x32xf32>
    %208 = arith.mulf %203, %207 : vector<2x32xf32>
    %209 = vector.extract_strided_slice %5 {offsets = [8, 0], sizes = [2, 128], strides = [1, 1]} : vector<16x128xf32> to vector<2x128xf32>
    %cst_41 = arith.constant dense<0.000000e+00> : vector<2x128xf32>
    %210 = tpu.matmul %184, %6, %cst_41 {dimension_numbers = #tpu.dot_dimension_numbers<[1], [0], [0], [1], [0, 0, 1, 1], [], []>} : vector<2x32xf32>, vector<32x128xf32>, vector<2x128xf32> -> vector<2x128xf32>
    %211 = arith.addf %209, %210 : vector<2x128xf32>
    %212 = vector.extract_strided_slice %211 {offsets = [0, 0], sizes = [2, 64], strides = [1, 1]} : vector<2x128xf32> to vector<2x64xf32>
    %213 = arith.negf %212 : vector<2x64xf32>
    %214 = math.exp %213 : vector<2x64xf32>
    %cst_42 = arith.constant 1.000000e+00 : f32
    %215 = vector.broadcast %cst_42 : f32 to vector<2x64xf32>
    %216 = arith.addf %215, %214 : vector<2x64xf32>
    %217 = arith.divf %215, %216 : vector<2x64xf32>
    %218 = vector.extract_strided_slice %217 {offsets = [0, 0], sizes = [2, 32], strides = [1, 1]} : vector<2x64xf32> to vector<2x32xf32>
    %219 = vector.extract_strided_slice %217 {offsets = [0, 32], sizes = [2, 32], strides = [1, 1]} : vector<2x64xf32> to vector<2x32xf32>
    %220 = vector.extract_strided_slice %211 {offsets = [0, 64], sizes = [2, 32], strides = [1, 1]} : vector<2x128xf32> to vector<2x32xf32>
    %221 = math.tanh %220 : vector<2x32xf32>
    %222 = vector.extract_strided_slice %211 {offsets = [0, 96], sizes = [2, 32], strides = [1, 1]} : vector<2x128xf32> to vector<2x32xf32>
    %223 = arith.negf %222 : vector<2x32xf32>
    %224 = math.exp %223 : vector<2x32xf32>
    %cst_43 = arith.constant 1.000000e+00 : f32
    %225 = vector.broadcast %cst_43 : f32 to vector<2x32xf32>
    %226 = arith.addf %225, %224 : vector<2x32xf32>
    %227 = arith.divf %225, %226 : vector<2x32xf32>
    %228 = arith.mulf %219, %182 : vector<2x32xf32>
    %229 = arith.mulf %218, %221 : vector<2x32xf32>
    %230 = arith.addf %228, %229 : vector<2x32xf32>
    %231 = math.tanh %230 : vector<2x32xf32>
    %232 = arith.mulf %227, %231 : vector<2x32xf32>
    %233 = tpu.concatenate %232, %208 in 1 : vector<2x32xf32>, vector<2x32xf32> -> vector<2x64xf32>
    %cst_44 = arith.constant dense<0.000000e+00> : vector<2x128xf32>
    %234 = tpu.matmul %233, %8, %cst_44 {dimension_numbers = #tpu.dot_dimension_numbers<[1], [0], [0], [1], [0, 0, 1, 1], [], []>} : vector<2x64xf32>, vector<64x128xf32>, vector<2x128xf32> -> vector<2x128xf32>
    %235 = arith.addf %234, %12 : vector<2x128xf32>
    %236 = vector.extract_strided_slice %235 {offsets = [0, 0], sizes = [2, 64], strides = [1, 1]} : vector<2x128xf32> to vector<2x64xf32>
    %237 = arith.negf %236 : vector<2x64xf32>
    %238 = math.exp %237 : vector<2x64xf32>
    %cst_45 = arith.constant 1.000000e+00 : f32
    %239 = vector.broadcast %cst_45 : f32 to vector<2x64xf32>
    %240 = arith.addf %239, %238 : vector<2x64xf32>
    %241 = arith.divf %239, %240 : vector<2x64xf32>
    %242 = vector.extract_strided_slice %241 {offsets = [0, 0], sizes = [2, 32], strides = [1, 1]} : vector<2x64xf32> to vector<2x32xf32>
    %243 = vector.extract_strided_slice %241 {offsets = [0, 32], sizes = [2, 32], strides = [1, 1]} : vector<2x64xf32> to vector<2x32xf32>
    %244 = vector.extract_strided_slice %235 {offsets = [0, 64], sizes = [2, 32], strides = [1, 1]} : vector<2x128xf32> to vector<2x32xf32>
    %245 = math.tanh %244 : vector<2x32xf32>
    %246 = vector.extract_strided_slice %235 {offsets = [0, 96], sizes = [2, 32], strides = [1, 1]} : vector<2x128xf32> to vector<2x32xf32>
    %247 = arith.negf %246 : vector<2x32xf32>
    %248 = math.exp %247 : vector<2x32xf32>
    %cst_46 = arith.constant 1.000000e+00 : f32
    %249 = vector.broadcast %cst_46 : f32 to vector<2x32xf32>
    %250 = arith.addf %249, %248 : vector<2x32xf32>
    %251 = arith.divf %249, %250 : vector<2x32xf32>
    %252 = arith.mulf %243, %206 : vector<2x32xf32>
    %253 = arith.mulf %242, %245 : vector<2x32xf32>
    %254 = arith.addf %252, %253 : vector<2x32xf32>
    %255 = math.tanh %254 : vector<2x32xf32>
    %256 = arith.mulf %251, %255 : vector<2x32xf32>
    %257 = vector.extract_strided_slice %5 {offsets = [10, 0], sizes = [2, 128], strides = [1, 1]} : vector<16x128xf32> to vector<2x128xf32>
    %cst_47 = arith.constant dense<0.000000e+00> : vector<2x128xf32>
    %258 = tpu.matmul %232, %6, %cst_47 {dimension_numbers = #tpu.dot_dimension_numbers<[1], [0], [0], [1], [0, 0, 1, 1], [], []>} : vector<2x32xf32>, vector<32x128xf32>, vector<2x128xf32> -> vector<2x128xf32>
    %259 = arith.addf %257, %258 : vector<2x128xf32>
    %260 = vector.extract_strided_slice %259 {offsets = [0, 0], sizes = [2, 64], strides = [1, 1]} : vector<2x128xf32> to vector<2x64xf32>
    %261 = arith.negf %260 : vector<2x64xf32>
    %262 = math.exp %261 : vector<2x64xf32>
    %cst_48 = arith.constant 1.000000e+00 : f32
    %263 = vector.broadcast %cst_48 : f32 to vector<2x64xf32>
    %264 = arith.addf %263, %262 : vector<2x64xf32>
    %265 = arith.divf %263, %264 : vector<2x64xf32>
    %266 = vector.extract_strided_slice %265 {offsets = [0, 0], sizes = [2, 32], strides = [1, 1]} : vector<2x64xf32> to vector<2x32xf32>
    %267 = vector.extract_strided_slice %265 {offsets = [0, 32], sizes = [2, 32], strides = [1, 1]} : vector<2x64xf32> to vector<2x32xf32>
    %268 = vector.extract_strided_slice %259 {offsets = [0, 64], sizes = [2, 32], strides = [1, 1]} : vector<2x128xf32> to vector<2x32xf32>
    %269 = math.tanh %268 : vector<2x32xf32>
    %270 = vector.extract_strided_slice %259 {offsets = [0, 96], sizes = [2, 32], strides = [1, 1]} : vector<2x128xf32> to vector<2x32xf32>
    %271 = arith.negf %270 : vector<2x32xf32>
    %272 = math.exp %271 : vector<2x32xf32>
    %cst_49 = arith.constant 1.000000e+00 : f32
    %273 = vector.broadcast %cst_49 : f32 to vector<2x32xf32>
    %274 = arith.addf %273, %272 : vector<2x32xf32>
    %275 = arith.divf %273, %274 : vector<2x32xf32>
    %276 = arith.mulf %267, %230 : vector<2x32xf32>
    %277 = arith.mulf %266, %269 : vector<2x32xf32>
    %278 = arith.addf %276, %277 : vector<2x32xf32>
    %279 = math.tanh %278 : vector<2x32xf32>
    %280 = arith.mulf %275, %279 : vector<2x32xf32>
    %281 = tpu.concatenate %280, %256 in 1 : vector<2x32xf32>, vector<2x32xf32> -> vector<2x64xf32>
    %cst_50 = arith.constant dense<0.000000e+00> : vector<2x128xf32>
    %282 = tpu.matmul %281, %8, %cst_50 {dimension_numbers = #tpu.dot_dimension_numbers<[1], [0], [0], [1], [0, 0, 1, 1], [], []>} : vector<2x64xf32>, vector<64x128xf32>, vector<2x128xf32> -> vector<2x128xf32>
    %283 = arith.addf %282, %12 : vector<2x128xf32>
    %284 = vector.extract_strided_slice %283 {offsets = [0, 0], sizes = [2, 64], strides = [1, 1]} : vector<2x128xf32> to vector<2x64xf32>
    %285 = arith.negf %284 : vector<2x64xf32>
    %286 = math.exp %285 : vector<2x64xf32>
    %cst_51 = arith.constant 1.000000e+00 : f32
    %287 = vector.broadcast %cst_51 : f32 to vector<2x64xf32>
    %288 = arith.addf %287, %286 : vector<2x64xf32>
    %289 = arith.divf %287, %288 : vector<2x64xf32>
    %290 = vector.extract_strided_slice %289 {offsets = [0, 0], sizes = [2, 32], strides = [1, 1]} : vector<2x64xf32> to vector<2x32xf32>
    %291 = vector.extract_strided_slice %289 {offsets = [0, 32], sizes = [2, 32], strides = [1, 1]} : vector<2x64xf32> to vector<2x32xf32>
    %292 = vector.extract_strided_slice %283 {offsets = [0, 64], sizes = [2, 32], strides = [1, 1]} : vector<2x128xf32> to vector<2x32xf32>
    %293 = math.tanh %292 : vector<2x32xf32>
    %294 = vector.extract_strided_slice %283 {offsets = [0, 96], sizes = [2, 32], strides = [1, 1]} : vector<2x128xf32> to vector<2x32xf32>
    %295 = arith.negf %294 : vector<2x32xf32>
    %296 = math.exp %295 : vector<2x32xf32>
    %cst_52 = arith.constant 1.000000e+00 : f32
    %297 = vector.broadcast %cst_52 : f32 to vector<2x32xf32>
    %298 = arith.addf %297, %296 : vector<2x32xf32>
    %299 = arith.divf %297, %298 : vector<2x32xf32>
    %300 = arith.mulf %291, %254 : vector<2x32xf32>
    %301 = arith.mulf %290, %293 : vector<2x32xf32>
    %302 = arith.addf %300, %301 : vector<2x32xf32>
    %303 = math.tanh %302 : vector<2x32xf32>
    %304 = arith.mulf %299, %303 : vector<2x32xf32>
    %305 = vector.extract_strided_slice %5 {offsets = [12, 0], sizes = [2, 128], strides = [1, 1]} : vector<16x128xf32> to vector<2x128xf32>
    %cst_53 = arith.constant dense<0.000000e+00> : vector<2x128xf32>
    %306 = tpu.matmul %280, %6, %cst_53 {dimension_numbers = #tpu.dot_dimension_numbers<[1], [0], [0], [1], [0, 0, 1, 1], [], []>} : vector<2x32xf32>, vector<32x128xf32>, vector<2x128xf32> -> vector<2x128xf32>
    %307 = arith.addf %305, %306 : vector<2x128xf32>
    %308 = vector.extract_strided_slice %307 {offsets = [0, 0], sizes = [2, 64], strides = [1, 1]} : vector<2x128xf32> to vector<2x64xf32>
    %309 = arith.negf %308 : vector<2x64xf32>
    %310 = math.exp %309 : vector<2x64xf32>
    %cst_54 = arith.constant 1.000000e+00 : f32
    %311 = vector.broadcast %cst_54 : f32 to vector<2x64xf32>
    %312 = arith.addf %311, %310 : vector<2x64xf32>
    %313 = arith.divf %311, %312 : vector<2x64xf32>
    %314 = vector.extract_strided_slice %313 {offsets = [0, 0], sizes = [2, 32], strides = [1, 1]} : vector<2x64xf32> to vector<2x32xf32>
    %315 = vector.extract_strided_slice %313 {offsets = [0, 32], sizes = [2, 32], strides = [1, 1]} : vector<2x64xf32> to vector<2x32xf32>
    %316 = vector.extract_strided_slice %307 {offsets = [0, 64], sizes = [2, 32], strides = [1, 1]} : vector<2x128xf32> to vector<2x32xf32>
    %317 = math.tanh %316 : vector<2x32xf32>
    %318 = vector.extract_strided_slice %307 {offsets = [0, 96], sizes = [2, 32], strides = [1, 1]} : vector<2x128xf32> to vector<2x32xf32>
    %319 = arith.negf %318 : vector<2x32xf32>
    %320 = math.exp %319 : vector<2x32xf32>
    %cst_55 = arith.constant 1.000000e+00 : f32
    %321 = vector.broadcast %cst_55 : f32 to vector<2x32xf32>
    %322 = arith.addf %321, %320 : vector<2x32xf32>
    %323 = arith.divf %321, %322 : vector<2x32xf32>
    %324 = arith.mulf %315, %278 : vector<2x32xf32>
    %325 = arith.mulf %314, %317 : vector<2x32xf32>
    %326 = arith.addf %324, %325 : vector<2x32xf32>
    %327 = math.tanh %326 : vector<2x32xf32>
    %328 = arith.mulf %323, %327 : vector<2x32xf32>
    %329 = tpu.concatenate %328, %304 in 1 : vector<2x32xf32>, vector<2x32xf32> -> vector<2x64xf32>
    %cst_56 = arith.constant dense<0.000000e+00> : vector<2x128xf32>
    %330 = tpu.matmul %329, %8, %cst_56 {dimension_numbers = #tpu.dot_dimension_numbers<[1], [0], [0], [1], [0, 0, 1, 1], [], []>} : vector<2x64xf32>, vector<64x128xf32>, vector<2x128xf32> -> vector<2x128xf32>
    %331 = arith.addf %330, %12 : vector<2x128xf32>
    %332 = vector.extract_strided_slice %331 {offsets = [0, 0], sizes = [2, 64], strides = [1, 1]} : vector<2x128xf32> to vector<2x64xf32>
    %333 = arith.negf %332 : vector<2x64xf32>
    %334 = math.exp %333 : vector<2x64xf32>
    %cst_57 = arith.constant 1.000000e+00 : f32
    %335 = vector.broadcast %cst_57 : f32 to vector<2x64xf32>
    %336 = arith.addf %335, %334 : vector<2x64xf32>
    %337 = arith.divf %335, %336 : vector<2x64xf32>
    %338 = vector.extract_strided_slice %337 {offsets = [0, 0], sizes = [2, 32], strides = [1, 1]} : vector<2x64xf32> to vector<2x32xf32>
    %339 = vector.extract_strided_slice %337 {offsets = [0, 32], sizes = [2, 32], strides = [1, 1]} : vector<2x64xf32> to vector<2x32xf32>
    %340 = vector.extract_strided_slice %331 {offsets = [0, 64], sizes = [2, 32], strides = [1, 1]} : vector<2x128xf32> to vector<2x32xf32>
    %341 = math.tanh %340 : vector<2x32xf32>
    %342 = vector.extract_strided_slice %331 {offsets = [0, 96], sizes = [2, 32], strides = [1, 1]} : vector<2x128xf32> to vector<2x32xf32>
    %343 = arith.negf %342 : vector<2x32xf32>
    %344 = math.exp %343 : vector<2x32xf32>
    %cst_58 = arith.constant 1.000000e+00 : f32
    %345 = vector.broadcast %cst_58 : f32 to vector<2x32xf32>
    %346 = arith.addf %345, %344 : vector<2x32xf32>
    %347 = arith.divf %345, %346 : vector<2x32xf32>
    %348 = arith.mulf %339, %302 : vector<2x32xf32>
    %349 = arith.mulf %338, %341 : vector<2x32xf32>
    %350 = arith.addf %348, %349 : vector<2x32xf32>
    %351 = math.tanh %350 : vector<2x32xf32>
    %352 = arith.mulf %347, %351 : vector<2x32xf32>
    %353 = vector.extract_strided_slice %5 {offsets = [14, 0], sizes = [2, 128], strides = [1, 1]} : vector<16x128xf32> to vector<2x128xf32>
    %cst_59 = arith.constant dense<0.000000e+00> : vector<2x128xf32>
    %354 = tpu.matmul %328, %6, %cst_59 {dimension_numbers = #tpu.dot_dimension_numbers<[1], [0], [0], [1], [0, 0, 1, 1], [], []>} : vector<2x32xf32>, vector<32x128xf32>, vector<2x128xf32> -> vector<2x128xf32>
    %355 = arith.addf %353, %354 : vector<2x128xf32>
    %356 = vector.extract_strided_slice %355 {offsets = [0, 0], sizes = [2, 64], strides = [1, 1]} : vector<2x128xf32> to vector<2x64xf32>
    %357 = arith.negf %356 : vector<2x64xf32>
    %358 = math.exp %357 : vector<2x64xf32>
    %cst_60 = arith.constant 1.000000e+00 : f32
    %359 = vector.broadcast %cst_60 : f32 to vector<2x64xf32>
    %360 = arith.addf %359, %358 : vector<2x64xf32>
    %361 = arith.divf %359, %360 : vector<2x64xf32>
    %362 = vector.extract_strided_slice %361 {offsets = [0, 0], sizes = [2, 32], strides = [1, 1]} : vector<2x64xf32> to vector<2x32xf32>
    %363 = vector.extract_strided_slice %361 {offsets = [0, 32], sizes = [2, 32], strides = [1, 1]} : vector<2x64xf32> to vector<2x32xf32>
    %364 = vector.extract_strided_slice %355 {offsets = [0, 64], sizes = [2, 32], strides = [1, 1]} : vector<2x128xf32> to vector<2x32xf32>
    %365 = math.tanh %364 : vector<2x32xf32>
    %366 = vector.extract_strided_slice %355 {offsets = [0, 96], sizes = [2, 32], strides = [1, 1]} : vector<2x128xf32> to vector<2x32xf32>
    %367 = arith.negf %366 : vector<2x32xf32>
    %368 = math.exp %367 : vector<2x32xf32>
    %cst_61 = arith.constant 1.000000e+00 : f32
    %369 = vector.broadcast %cst_61 : f32 to vector<2x32xf32>
    %370 = arith.addf %369, %368 : vector<2x32xf32>
    %371 = arith.divf %369, %370 : vector<2x32xf32>
    %372 = arith.mulf %363, %326 : vector<2x32xf32>
    %373 = arith.mulf %362, %365 : vector<2x32xf32>
    %374 = arith.addf %372, %373 : vector<2x32xf32>
    %375 = math.tanh %374 : vector<2x32xf32>
    %376 = arith.mulf %371, %375 : vector<2x32xf32>
    %377 = tpu.concatenate %376, %352 in 1 : vector<2x32xf32>, vector<2x32xf32> -> vector<2x64xf32>
    %cst_62 = arith.constant dense<0.000000e+00> : vector<2x128xf32>
    %378 = tpu.matmul %377, %8, %cst_62 {dimension_numbers = #tpu.dot_dimension_numbers<[1], [0], [0], [1], [0, 0, 1, 1], [], []>} : vector<2x64xf32>, vector<64x128xf32>, vector<2x128xf32> -> vector<2x128xf32>
    %379 = arith.addf %378, %12 : vector<2x128xf32>
    %380 = vector.extract_strided_slice %379 {offsets = [0, 0], sizes = [2, 64], strides = [1, 1]} : vector<2x128xf32> to vector<2x64xf32>
    %381 = arith.negf %380 : vector<2x64xf32>
    %382 = math.exp %381 : vector<2x64xf32>
    %cst_63 = arith.constant 1.000000e+00 : f32
    %383 = vector.broadcast %cst_63 : f32 to vector<2x64xf32>
    %384 = arith.addf %383, %382 : vector<2x64xf32>
    %385 = arith.divf %383, %384 : vector<2x64xf32>
    %386 = vector.extract_strided_slice %385 {offsets = [0, 0], sizes = [2, 32], strides = [1, 1]} : vector<2x64xf32> to vector<2x32xf32>
    %387 = vector.extract_strided_slice %385 {offsets = [0, 32], sizes = [2, 32], strides = [1, 1]} : vector<2x64xf32> to vector<2x32xf32>
    %388 = vector.extract_strided_slice %379 {offsets = [0, 64], sizes = [2, 32], strides = [1, 1]} : vector<2x128xf32> to vector<2x32xf32>
    %389 = math.tanh %388 : vector<2x32xf32>
    %390 = vector.extract_strided_slice %379 {offsets = [0, 96], sizes = [2, 32], strides = [1, 1]} : vector<2x128xf32> to vector<2x32xf32>
    %391 = arith.negf %390 : vector<2x32xf32>
    %392 = math.exp %391 : vector<2x32xf32>
    %cst_64 = arith.constant 1.000000e+00 : f32
    %393 = vector.broadcast %cst_64 : f32 to vector<2x32xf32>
    %394 = arith.addf %393, %392 : vector<2x32xf32>
    %395 = arith.divf %393, %394 : vector<2x32xf32>
    %396 = arith.mulf %387, %350 : vector<2x32xf32>
    %397 = arith.mulf %386, %389 : vector<2x32xf32>
    %398 = arith.addf %396, %397 : vector<2x32xf32>
    %399 = math.tanh %398 : vector<2x32xf32>
    %400 = arith.mulf %395, %399 : vector<2x32xf32>
    %401 = tpu.concatenate %64, %112, %160, %208, %256, %304, %352, %400 in 1 : vector<2x32xf32>, vector<2x32xf32>, vector<2x32xf32>, vector<2x32xf32>, vector<2x32xf32>, vector<2x32xf32>, vector<2x32xf32>, vector<2x32xf32> -> vector<2x256xf32>
    %c0_65 = arith.constant 0 : index
    %c0_66 = arith.constant 0 : index
    %402 = vector.load %arg7[%c0_65, %c0_66] : memref<256x32xf32, #tpu.memory_space<vmem>>, vector<256x32xf32>
    %cst_67 = arith.constant dense<0.000000e+00> : vector<2x32xf32>
    %403 = tpu.matmul %401, %402, %cst_67 {dimension_numbers = #tpu.dot_dimension_numbers<[1], [0], [0], [1], [0, 0, 1, 1], [], []>} : vector<2x256xf32>, vector<256x32xf32>, vector<2x32xf32> -> vector<2x32xf32>
    %c0_68 = arith.constant 0 : index
    %c0_69 = arith.constant 0 : index
    %404 = vector.load %arg8[%c0_68, %c0_69] : memref<1x32xf32, #tpu.memory_space<vmem>>, vector<1x32xf32>
    %405 = vector.broadcast %404 : vector<1x32xf32> to vector<2x32xf32>
    %406 = arith.addf %403, %405 : vector<2x32xf32>
    %cst_70 = arith.constant 0.000000e+00 : f32
    %407 = vector.broadcast %cst_70 : f32 to vector<2x32xf32>
    %408 = arith.maximumf %406, %407 : vector<2x32xf32>
    %c0_71 = arith.constant 0 : index
    %c0_72 = arith.constant 0 : index
    %409 = vector.load %arg1[%c0_71, %c0_72] : memref<2x1xf32, #tpu.memory_space<vmem>>, vector<2x1xf32>
    %410 = tpu.concatenate %408, %409 in 1 : vector<2x32xf32>, vector<2x1xf32> -> vector<2x33xf32>
    %c0_73 = arith.constant 0 : index
    %c0_74 = arith.constant 0 : index
    %411 = vector.load %arg9[%c0_73, %c0_74] : memref<33x32xf32, #tpu.memory_space<vmem>>, vector<33x32xf32>
    %cst_75 = arith.constant dense<0.000000e+00> : vector<2x32xf32>
    %412 = tpu.matmul %410, %411, %cst_75 {dimension_numbers = #tpu.dot_dimension_numbers<[1], [0], [0], [1], [0, 0, 1, 1], [], []>} : vector<2x33xf32>, vector<33x32xf32>, vector<2x32xf32> -> vector<2x32xf32>
    %c0_76 = arith.constant 0 : index
    %c0_77 = arith.constant 0 : index
    %413 = vector.load %arg10[%c0_76, %c0_77] : memref<1x32xf32, #tpu.memory_space<vmem>>, vector<1x32xf32>
    %414 = vector.broadcast %413 : vector<1x32xf32> to vector<2x32xf32>
    %415 = arith.addf %412, %414 : vector<2x32xf32>
    %c0_78 = arith.constant 0 : index
    %c0_79 = arith.constant 0 : index
    %416 = vector.load %arg11[%c0_78, %c0_79] : memref<2x32xf32, #tpu.memory_space<vmem>>, vector<2x32xf32>
    tpu.vector_store %arg11[%c0_78, %c0_79], %415 {strides = array<i32>} : memref<2x32xf32, #tpu.memory_space<vmem>>, vector<2x32xf32>,
    return
  }
}

</mosaic_0001>

<llo_original>
// kernel: tpu_custom_call.1
$region0: #{tpu_custom_call.1}
  #allocation0 [shape = 'u32[]', space=smem, size = 0x4, offset = 0x4, fixed_abs, tag = 'smem constant byte address 0x4 - core index']
  #allocation1 [shape = 'u32[72,128]{1,0:T(1,128)}', space=vmem, size = 0x9000, scoped, tag = 'internal scratch']
  %s0 = inlined_call_operand.vmem [shape: f32[16,8], index: 0, kind: input, shape index: {}]
  %s1 = inlined_call_operand.vmem [shape: f32[2,1], index: 1, kind: input, shape index: {}]
  %s2 = inlined_call_operand.vmem [shape: f32[8,128], index: 2, kind: input, shape index: {}]
  %s3 = inlined_call_operand.vmem [shape: f32[1,128], index: 3, kind: input, shape index: {}]
  %s4 = inlined_call_operand.vmem [shape: f32[32,128], index: 4, kind: input, shape index: {}]
  %s5 = inlined_call_operand.vmem [shape: f32[1,64,128], index: 5, kind: input, shape index: {}]
  %s6 = inlined_call_operand.vmem [shape: f32[1,1,128], index: 6, kind: input, shape index: {}]
  %s7 = inlined_call_operand.vmem [shape: f32[256,32], index: 7, kind: input, shape index: {}]
  %s8 = inlined_call_operand.vmem [shape: f32[1,32], index: 8, kind: input, shape index: {}]
  %s9 = inlined_call_operand.vmem [shape: f32[33,32], index: 9, kind: input, shape index: {}]
  %s10 = inlined_call_operand.vmem [shape: f32[1,32], index: 10, kind: input, shape index: {}]
  %s11 = inlined_call_operand.hbm [shape: f32[2,32], index: 11, kind: output, shape index: {}]
  %s12 = sld [smem:[#allocation0]]
  $region54: #{tpu_custom_call.1} parent=0
    _
  %s14 = ssub.s32 1, %s12
  %s15 = scalar_select 0, %s14, %s12
  $region1: #{tpu_custom_call.1} parent=0
    #allocation2 [shape = 'u8[1024]{0}', space=vmem, size = 0x400, scoped, tag = 'output window, operand 0, single buffered']
    #allocation3 [shape = 's32[1]{0}', space=sflag, size = 0x4, scoped, tag = 'scoped memory for tpu_custom_call.1']
    %16 = vsyncpa [#allocation3], 0
    // Predicated region
    $region2: #{tpu_custom_call.1} parent=1 // pred_check
      _
    $region3: #{tpu_custom_call.1} parent=1 // pred_check_branch
      %18 = sbr.rel (0) target = $region5
    $region4: #{tpu_custom_call.1} parent=1 // pred_region
      _
    $region5: #{tpu_custom_call.1} parent=1 // pred_fallthru
      _
    // Predicated region
    $region6: #{tpu_custom_call.1} parent=1 // pred_check
      _
    $region7: #{tpu_custom_call.1} parent=1 // pred_check_branch
      %20 = sbr.rel (0) target = $region9
    $region8: #{tpu_custom_call.1} parent=1 // pred_region
      _
    $region9: #{tpu_custom_call.1} parent=1 // pred_fallthru
      _
    // Predicated region
    $region10: #{tpu_custom_call.1} parent=1 // pred_check
      _
    $region11: #{tpu_custom_call.1} parent=1 // pred_check_branch
      %22 = sbr.rel (0) target = $region13
    $region12: #{tpu_custom_call.1} parent=1 // pred_region
      _
    $region13: #{tpu_custom_call.1} parent=1 // pred_fallthru
      _
    // Predicated region
    $region14: #{tpu_custom_call.1} parent=1 // pred_check
      _
    $region15: #{tpu_custom_call.1} parent=1 // pred_check_branch
      %24 = sbr.rel (0) target = $region17
    $region16: #{tpu_custom_call.1} parent=1 // pred_region
      _
    $region17: #{tpu_custom_call.1} parent=1 // pred_fallthru
      _
    // Predicated region
    $region18: #{tpu_custom_call.1} parent=1 // pred_check
      _
    $region19: #{tpu_custom_call.1} parent=1 // pred_check_branch
      %26 = sbr.rel (0) target = $region21
    $region20: #{tpu_custom_call.1} parent=1 // pred_region
      _
    $region21: #{tpu_custom_call.1} parent=1 // pred_fallthru
      _
    // Predicated region
    $region22: #{tpu_custom_call.1} parent=1 // pred_check
      _
    $region23: #{tpu_custom_call.1} parent=1 // pred_check_branch
      %28 = sbr.rel (0) target = $region25
    $region24: #{tpu_custom_call.1} parent=1 // pred_region
      _
    $region25: #{tpu_custom_call.1} parent=1 // pred_fallthru
      _
    // Predicated region
    $region26: #{tpu_custom_call.1} parent=1 // pred_check
      _
    $region27: #{tpu_custom_call.1} parent=1 // pred_check_branch
      %30 = sbr.rel (0) target = $region29
    $region28: #{tpu_custom_call.1} parent=1 // pred_region
      _
    $region29: #{tpu_custom_call.1} parent=1 // pred_fallthru
      _
    // Predicated region
    $region30: #{tpu_custom_call.1} parent=1 // pred_check
      _
    $region31: #{tpu_custom_call.1} parent=1 // pred_check_branch
      %32 = sbr.rel (0) target = $region33
    $region32: #{tpu_custom_call.1} parent=1 // pred_region
      _
    $region33: #{tpu_custom_call.1} parent=1 // pred_fallthru
      _
    // Predicated region
    $region34: #{tpu_custom_call.1} parent=1 // pred_check
      _
    $region35: #{tpu_custom_call.1} parent=1 // pred_check_branch
      %34 = sbr.rel (0) target = $region37
    $region36: #{tpu_custom_call.1} parent=1 // pred_region
      _
    $region37: #{tpu_custom_call.1} parent=1 // pred_fallthru
      _
    // Predicated region
    $region38: #{tpu_custom_call.1} parent=1 // pred_check
      _
    $region39: #{tpu_custom_call.1} parent=1 // pred_check_branch
      %36 = sbr.rel (0) target = $region41
    $region40: #{tpu_custom_call.1} parent=1 // pred_region
      _
    $region41: #{tpu_custom_call.1} parent=1 // pred_fallthru
      _
    // Predicated region
    $region42: #{tpu_custom_call.1} parent=1 // pred_check
      _
    $region43: #{tpu_custom_call.1} parent=1 // pred_check_branch
      %38 = sbr.rel (0) target = $region45
    $region44: #{tpu_custom_call.1} parent=1 // pred_region
      _
    $region45: #{tpu_custom_call.1} parent=1 // pred_fallthru
      _
    %v39 = vld [vmem:[%s0] sm:$0xff]
    %v40 = vld [vmem:[%s0 + $0x8] sm:$0xff]
    %v41 = vld [vmem:[%s2] sm:$0xff]
    %v42 = vld [vmem:[%s3] sm:$0x1]
    %v44 = vperm.slane %v42, 0
    %vm46 = vcmask 64512
    %v48 = vsel %vm46, %v39, 0
    %v51 = vsel %vm46, %v40, 0
    %53 = vmatpush.msra.mxu0 0.0
    %54 = vmatpush.msra.mxu0 0.0
    %55 = vmatpush.msra.mxu0 0.0
    %56 = vmatpush.msra.mxu0 0.0
    %57 = vmatpush.msra.mxu0 0.0
    %58 = vmatpush.msra.mxu0 0.0
    %59 = vmatpush.msra.mxu0 0.0
    %60 = vmatpush.msra.mxu0 0.0
    %61 = vmatpush.msra.mxu0 0.0
    %62 = vmatpush.msra.mxu0 0.0
    %63 = vmatpush.msra.mxu0 0.0
    %64 = vmatpush.msra.mxu0 0.0
    %65 = vmatpush.msra.mxu0 0.0
    %66 = vmatpush.msra.mxu0 0.0
    %67 = vmatpush.msra.mxu0 0.0
    %68 = vmatpush.msra.mxu0 %v41
    %69 = vmatmul.f32.gmra.mxu0 %v48
    %v70 = vpop.f32.mrf.mxu0
    %v71 = vadd.f32 %v44, %v70
    %72 = vmatmul.f32.gmra.mxu0 %v51
    %v73 = vpop.f32.mrf.mxu0
    %v74 = vadd.f32 %v44, %v73
    %75 = vdwg.mxu0
    %v76 = vld [vmem:[%s4] sm:$0xff]
    %v77 = vld [vmem:[%s4 + $0x8] sm:$0xff]
    %v78 = vld [vmem:[%s4 + $0x10] sm:$0xff]
    %v79 = vld [vmem:[%s4 + $0x18] sm:$0xff]
    %v80 = vld [vmem:[%s5] sm:$0xff]
    %v81 = vld [vmem:[%s5 + $0x8] sm:$0xff]
    %v82 = vld [vmem:[%s5 + $0x10] sm:$0xff]
    %v83 = vld [vmem:[%s5 + $0x18] sm:$0xff]
    %v84 = vld [vmem:[%s5 + $0x20] sm:$0xff]
    %v85 = vld [vmem:[%s5 + $0x28] sm:$0xff]
    %v86 = vld [vmem:[%s5 + $0x30] sm:$0xff]
    %v87 = vld [vmem:[%s5 + $0x38] sm:$0xff]
    %v88 = vld [vmem:[%s6] sm:$0x1]
    %v90 = vperm.slane %v88, 0
    %vm92 = vcmask 261120
    %v94 = vsel %vm92, 0.0, 0
    %96 = vmatpush.msra.mxu0 0.0
    %97 = vmatpush.msra.mxu0 0.0
    %98 = vmatpush.msra.mxu0 0.0
    %99 = vmatpush.msra.mxu0 0.0
    %100 = vmatpush.msra.mxu0 0.0
    %101 = vmatpush.msra.mxu0 0.0
    %102 = vmatpush.msra.mxu0 0.0
    %103 = vmatpush.msra.mxu0 0.0
    %104 = vmatpush.msra.mxu0 0.0
    %105 = vmatpush.msra.mxu0 0.0
    %106 = vmatpush.msra.mxu0 0.0
    %107 = vmatpush.msra.mxu0 0.0
    %108 = vmatpush.msra.mxu0 %v79
    %109 = vmatpush.msra.mxu0 %v78
    %110 = vmatpush.msra.mxu0 %v77
    %111 = vmatpush.msra.mxu0 %v76
    %112 = vmatmul.f32.gmra.mxu0 %v94
    %v113 = vpop.f32.mrf.mxu0
    %v114 = vadd.f32 0.0, %v113
    %115 = vdwg.mxu0
    %v116 = vadd.f32 %v71, %v114
    %v117 = vxor.u32 %v116, 2147483648
    %v118 = vmul.f32 %v117, 1.442695
    %v119 = vpow.pop %v118
    %v120 = vadd.f32 %v119, 1.0
    %v121 = vrcp.pop %v120
    %v122 = vmul.f32 %v120, %v121
    %v123 = vsub.f32 1.0, %v122
    %v124 = vmul.f32 %v121, %v123
    %v125 = vadd.f32 %v121, %v124
    %vm126 = vweird.f32 %v120
    %vm127 = vweird.f32 %v121
    %vm128 = vmor %vm126, %vm127
    %v129 = vsel %vm128, %v121, %v125
    %v130 = vand.u32 2147483647, %v120
    %vm131 = vcmp.eq.f32.partialorder %v130, 8.507059e+37
    %v132 = vand.u32 %v120, 2147483648
    %v133 = vor.u32 1.1754944e-38, %v132
    %v134 = vsel %vm131, %v133, %v129
    %v135 = vmul.f32 1.0, %v134
    %v136 = vtanh.pop %v116
    %v137 = vmul.f32 %v135, 0.0
    %139 = vrot.lane.b32.xlu0 %v136, 64
    %v140 = vpop.permute.xlu0 %139
    %v142 = vmul.f32 %v135, %v140
    %144 = vrot.lane.b32.xlu0 %v142, 32
    %v145 = vpop.permute.xlu0 %144
    %v147 = vadd.f32 %v137, %v145
    %v148 = vtanh.pop %v147
    %150 = vrot.lane.b32.xlu0 %v148, 64
    %v151 = vpop.permute.xlu0 %150
    %v153 = vmul.f32 %v135, %v151
    %155 = vrot.lane.b32.xlu0 %v153, 32
    %v156 = vpop.permute.xlu0 %155
    %v158 = vsel %vm92, %v156, 0.0
    %vm159 = vcmask 523264
    %v161 = vsel %vm159, %v158, 0
    %163 = vmatpush.msra.mxu0 0.0
    %164 = vmatpush.msra.mxu0 0.0
    %165 = vmatpush.msra.mxu0 0.0
    %166 = vmatpush.msra.mxu0 0.0
    %167 = vmatpush.msra.mxu0 0.0
    %168 = vmatpush.msra.mxu0 0.0
    %169 = vmatpush.msra.mxu0 0.0
    %170 = vmatpush.msra.mxu0 0.0
    %171 = vmatpush.msra.mxu0 %v87
    %172 = vmatpush.msra.mxu0 %v86
    %173 = vmatpush.msra.mxu0 %v85
    %174 = vmatpush.msra.mxu0 %v84
    %175 = vmatpush.msra.mxu0 %v83
    %176 = vmatpush.msra.mxu0 %v82
    %177 = vmatpush.msra.mxu0 %v81
    %178 = vmatpush.msra.mxu0 %v80
    %179 = vmatmul.f32.gmra.mxu0 %v161
    %v180 = vpop.f32.mrf.mxu0
    %v181 = vadd.f32 %v90, %v180
    %182 = vdwg.mxu0
    %v183 = vxor.u32 %v181, 2147483648
    %v184 = vmul.f32 %v183, 1.442695
    %v185 = vpow.pop %v184
    %v186 = vadd.f32 %v185, 1.0
    %v187 = vrcp.pop %v186
    %v188 = vmul.f32 %v186, %v187
    %v189 = vsub.f32 1.0, %v188
    %v190 = vmul.f32 %v187, %v189
    %v191 = vadd.f32 %v187, %v190
    %vm192 = vweird.f32 %v186
    %vm193 = vweird.f32 %v187
    %vm194 = vmor %vm192, %vm193
    %v195 = vsel %vm194, %v187, %v191
    %v196 = vand.u32 2147483647, %v186
    %vm197 = vcmp.eq.f32.partialorder %v196, 8.507059e+37
    %v198 = vand.u32 %v186, 2147483648
    %v199 = vor.u32 1.1754944e-38, %v198
    %v200 = vsel %vm197, %v199, %v195
    %v201 = vmul.f32 1.0, %v200
    %v202 = vtanh.pop %v181
    %v203 = vmul.f32 %v201, 0.0
    %205 = vrot.lane.b32.xlu0 %v202, 64
    %v206 = vpop.permute.xlu0 %205
    %v208 = vmul.f32 %v201, %v206
    %210 = vrot.lane.b32.xlu0 %v208, 32
    %v211 = vpop.permute.xlu0 %210
    %v213 = vadd.f32 %v203, %v211
    %v214 = vtanh.pop %v213
    %216 = vrot.lane.b32.xlu0 %v214, 64
    %v217 = vpop.permute.xlu0 %216
    %v219 = vmul.f32 %v201, %v217
    %v220 = vsel %vm92, %v156, 0
    %222 = vmatpush.msra.mxu0 0.0
    %223 = vmatpush.msra.mxu0 0.0
    %224 = vmatpush.msra.mxu0 0.0
    %225 = vmatpush.msra.mxu0 0.0
    %226 = vmatpush.msra.mxu0 0.0
    %227 = vmatpush.msra.mxu0 0.0
    %228 = vmatpush.msra.mxu0 0.0
    %229 = vmatpush.msra.mxu0 0.0
    %230 = vmatpush.msra.mxu0 0.0
    %231 = vmatpush.msra.mxu0 0.0
    %232 = vmatpush.msra.mxu0 0.0
    %233 = vmatpush.msra.mxu0 0.0
    %234 = vmatpush.msra.mxu0 %v79
    %235 = vmatpush.msra.mxu0 %v78
    %236 = vmatpush.msra.mxu0 %v77
    %237 = vmatpush.msra.mxu0 %v76
    %238 = vmatmul.f32.gmra.mxu0 %v220
    %v239 = vpop.f32.mrf.mxu0
    %v240 = vadd.f32 0.0, %v239
    %241 = vdwg.mxu0
    %v243 = vrot.slane %v240, 6
    %v245 = vadd.f32 %v71, %v243
    %v246 = vxor.u32 %v245, 2147483648
    %v247 = vmul.f32 %v246, 1.442695
    %v248 = vpow.pop %v247
    %v249 = vadd.f32 %v248, 1.0
    %v250 = vrcp.pop %v249
    %v251 = vmul.f32 %v249, %v250
    %v252 = vsub.f32 1.0, %v251
    %v253 = vmul.f32 %v250, %v252
    %v254 = vadd.f32 %v250, %v253
    %vm255 = vweird.f32 %v249
    %vm256 = vweird.f32 %v250
    %vm257 = vmor %vm255, %vm256
    %v258 = vsel %vm257, %v250, %v254
    %v259 = vand.u32 2147483647, %v249
    %vm260 = vcmp.eq.f32.partialorder %v259, 8.507059e+37
    %v261 = vand.u32 %v249, 2147483648
    %v262 = vor.u32 1.1754944e-38, %v261
    %v263 = vsel %vm260, %v262, %v258
    %v264 = vmul.f32 1.0, %v263
    %v265 = vtanh.pop %v245
    %v267 = vrot.slane %v147, 6
    %v269 = vmul.f32 %v264, %v267
    %271 = vrot.lane.b32.xlu0 %v265, 64
    %v272 = vpop.permute.xlu0 %271
    %v274 = vmul.f32 %v264, %v272
    %276 = vrot.lane.b32.xlu0 %v274, 32
    %v277 = vpop.permute.xlu0 %276
    %v279 = vadd.f32 %v269, %v277
    %v280 = vtanh.pop %v279
    %282 = vrot.lane.b32.xlu0 %v280, 64
    %v283 = vpop.permute.xlu0 %282
    %v285 = vmul.f32 %v264, %v283
    %287 = vrot.lane.b32.xlu0 %v285, 32
    %v288 = vpop.permute.xlu0 %287
    %v291 = vrot.slane %v219, 6
    %292 = vrot.lane.b32.xlu0 %v291, 64
    %v293 = vpop.permute.xlu0 %292
    %v295 = vsel %vm92, %v288, %v293
    %v297 = vrot.slane %v295, 2
    %v298 = vsel %vm159, %v297, 0
    %300 = vmatpush.msra.mxu0 0.0
    %301 = vmatpush.msra.mxu0 0.0
    %302 = vmatpush.msra.mxu0 0.0
    %303 = vmatpush.msra.mxu0 0.0
    %304 = vmatpush.msra.mxu0 0.0
    %305 = vmatpush.msra.mxu0 0.0
    %306 = vmatpush.msra.mxu0 0.0
    %307 = vmatpush.msra.mxu0 0.0
    %308 = vmatpush.msra.mxu0 %v87
    %309 = vmatpush.msra.mxu0 %v86
    %310 = vmatpush.msra.mxu0 %v85
    %311 = vmatpush.msra.mxu0 %v84
    %312 = vmatpush.msra.mxu0 %v83
    %313 = vmatpush.msra.mxu0 %v82
    %314 = vmatpush.msra.mxu0 %v81
    %315 = vmatpush.msra.mxu0 %v80
    %316 = vmatmul.f32.gmra.mxu0 %v298
    %v317 = vpop.f32.mrf.mxu0
    %v318 = vadd.f32 %v90, %v317
    %319 = vdwg.mxu0
    %v320 = vxor.u32 %v318, 2147483648
    %v321 = vmul.f32 %v320, 1.442695
    %v322 = vpow.pop %v321
    %v323 = vadd.f32 %v322, 1.0
    %v324 = vrcp.pop %v323
    %v325 = vmul.f32 %v323, %v324
    %v326 = vsub.f32 1.0, %v325
    %v327 = vmul.f32 %v324, %v326
    %v328 = vadd.f32 %v324, %v327
    %vm329 = vweird.f32 %v323
    %vm330 = vweird.f32 %v324
    %vm331 = vmor %vm329, %vm330
    %v332 = vsel %vm331, %v324, %v328
    %v333 = vand.u32 2147483647, %v323
    %vm334 = vcmp.eq.f32.partialorder %v333, 8.507059e+37
    %v335 = vand.u32 %v323, 2147483648
    %v336 = vor.u32 1.1754944e-38, %v335
    %v337 = vsel %vm334, %v336, %v332
    %v338 = vmul.f32 1.0, %v337
    %v339 = vtanh.pop %v318
    %v340 = vmul.f32 %v338, %v213
    %342 = vrot.lane.b32.xlu0 %v339, 64
    %v343 = vpop.permute.xlu0 %342
    %v345 = vmul.f32 %v338, %v343
    %347 = vrot.lane.b32.xlu0 %v345, 32
    %v348 = vpop.permute.xlu0 %347
    %v350 = vadd.f32 %v340, %v348
    %v351 = vtanh.pop %v350
    %353 = vrot.lane.b32.xlu0 %v351, 64
    %v354 = vpop.permute.xlu0 %353
    %v356 = vmul.f32 %v338, %v354
    %v357 = vrot.slane %v285, 2
    %358 = vrot.lane.b32.xlu0 %v357, 32
    %v359 = vpop.permute.xlu0 %358
    %v360 = vsel %vm92, %v359, 0
    %362 = vmatpush.msra.mxu0 0.0
    %363 = vmatpush.msra.mxu0 0.0
    %364 = vmatpush.msra.mxu0 0.0
    %365 = vmatpush.msra.mxu0 0.0
    %366 = vmatpush.msra.mxu0 0.0
    %367 = vmatpush.msra.mxu0 0.0
    %368 = vmatpush.msra.mxu0 0.0
    %369 = vmatpush.msra.mxu0 0.0
    %370 = vmatpush.msra.mxu0 0.0
    %371 = vmatpush.msra.mxu0 0.0
    %372 = vmatpush.msra.mxu0 0.0
    %373 = vmatpush.msra.mxu0 0.0
    %374 = vmatpush.msra.mxu0 %v79
    %375 = vmatpush.msra.mxu0 %v78
    %376 = vmatpush.msra.mxu0 %v77
    %377 = vmatpush.msra.mxu0 %v76
    %378 = vmatmul.f32.gmra.mxu0 %v360
    %v379 = vpop.f32.mrf.mxu0
    %v380 = vadd.f32 0.0, %v379
    %381 = vdwg.mxu0
    %v383 = vrot.slane %v380, 4
    %v385 = vadd.f32 %v71, %v383
    %v386 = vxor.u32 %v385, 2147483648
    %v387 = vmul.f32 %v386, 1.442695
    %v388 = vpow.pop %v387
    %v389 = vadd.f32 %v388, 1.0
    %v390 = vrcp.pop %v389
    %v391 = vmul.f32 %v389, %v390
    %v392 = vsub.f32 1.0, %v391
    %v393 = vmul.f32 %v390, %v392
    %v394 = vadd.f32 %v390, %v393
    %vm395 = vweird.f32 %v389
    %vm396 = vweird.f32 %v390
    %vm397 = vmor %vm395, %vm396
    %v398 = vsel %vm397, %v390, %v394
    %v399 = vand.u32 2147483647, %v389
    %vm400 = vcmp.eq.f32.partialorder %v399, 8.507059e+37
    %v401 = vand.u32 %v389, 2147483648
    %v402 = vor.u32 1.1754944e-38, %v401
    %v403 = vsel %vm400, %v402, %v398
    %v404 = vmul.f32 1.0, %v403
    %v405 = vtanh.pop %v385
    %v407 = vrot.slane %v279, 6
    %v409 = vmul.f32 %v404, %v407
    %411 = vrot.lane.b32.xlu0 %v405, 64
    %v412 = vpop.permute.xlu0 %411
    %v414 = vmul.f32 %v404, %v412
    %416 = vrot.lane.b32.xlu0 %v414, 32
    %v417 = vpop.permute.xlu0 %416
    %v419 = vadd.f32 %v409, %v417
    %v420 = vtanh.pop %v419
    %422 = vrot.lane.b32.xlu0 %v420, 64
    %v423 = vpop.permute.xlu0 %422
    %v425 = vmul.f32 %v404, %v423
    %427 = vrot.lane.b32.xlu0 %v425, 32
    %v428 = vpop.permute.xlu0 %427
    %v431 = vrot.slane %v356, 4
    %432 = vrot.lane.b32.xlu0 %v431, 64
    %v433 = vpop.permute.xlu0 %432
    %v435 = vsel %vm92, %v428, %v433
    %v437 = vrot.slane %v435, 4
    %v438 = vsel %vm159, %v437, 0
    %440 = vmatpush.msra.mxu0 0.0
    %441 = vmatpush.msra.mxu0 0.0
    %442 = vmatpush.msra.mxu0 0.0
    %443 = vmatpush.msra.mxu0 0.0
    %444 = vmatpush.msra.mxu0 0.0
    %445 = vmatpush.msra.mxu0 0.0
    %446 = vmatpush.msra.mxu0 0.0
    %447 = vmatpush.msra.mxu0 0.0
    %448 = vmatpush.msra.mxu0 %v87
    %449 = vmatpush.msra.mxu0 %v86
    %450 = vmatpush.msra.mxu0 %v85
    %451 = vmatpush.msra.mxu0 %v84
    %452 = vmatpush.msra.mxu0 %v83
    %453 = vmatpush.msra.mxu0 %v82
    %454 = vmatpush.msra.mxu0 %v81
    %455 = vmatpush.msra.mxu0 %v80
    %456 = vmatmul.f32.gmra.mxu0 %v438
    %v457 = vpop.f32.mrf.mxu0
    %v458 = vadd.f32 %v90, %v457
    %459 = vdwg.mxu0
    %v460 = vxor.u32 %v458, 2147483648
    %v461 = vmul.f32 %v460, 1.442695
    %v462 = vpow.pop %v461
    %v463 = vadd.f32 %v462, 1.0
    %v464 = vrcp.pop %v463
    %v465 = vmul.f32 %v463, %v464
    %v466 = vsub.f32 1.0, %v465
    %v467 = vmul.f32 %v464, %v466
    %v468 = vadd.f32 %v464, %v467
    %vm469 = vweird.f32 %v463
    %vm470 = vweird.f32 %v464
    %vm471 = vmor %vm469, %vm470
    %v472 = vsel %vm471, %v464, %v468
    %v473 = vand.u32 2147483647, %v463
    %vm474 = vcmp.eq.f32.partialorder %v473, 8.507059e+37
    %v475 = vand.u32 %v463, 2147483648
    %v476 = vor.u32 1.1754944e-38, %v475
    %v477 = vsel %vm474, %v476, %v472
    %v478 = vmul.f32 1.0, %v477
    %v479 = vtanh.pop %v458
    %v480 = vmul.f32 %v478, %v350
    %482 = vrot.lane.b32.xlu0 %v479, 64
    %v483 = vpop.permute.xlu0 %482
    %v485 = vmul.f32 %v478, %v483
    %487 = vrot.lane.b32.xlu0 %v485, 32
    %v488 = vpop.permute.xlu0 %487
    %v490 = vadd.f32 %v480, %v488
    %v491 = vtanh.pop %v490
    %493 = vrot.lane.b32.xlu0 %v491, 64
    %v494 = vpop.permute.xlu0 %493
    %v496 = vmul.f32 %v478, %v494
    %v497 = vrot.slane %v425, 4
    %498 = vrot.lane.b32.xlu0 %v497, 32
    %v499 = vpop.permute.xlu0 %498
    %v500 = vsel %vm92, %v499, 0
    %502 = vmatpush.msra.mxu0 0.0
    %503 = vmatpush.msra.mxu0 0.0
    %504 = vmatpush.msra.mxu0 0.0
    %505 = vmatpush.msra.mxu0 0.0
    %506 = vmatpush.msra.mxu0 0.0
    %507 = vmatpush.msra.mxu0 0.0
    %508 = vmatpush.msra.mxu0 0.0
    %509 = vmatpush.msra.mxu0 0.0
    %510 = vmatpush.msra.mxu0 0.0
    %511 = vmatpush.msra.mxu0 0.0
    %512 = vmatpush.msra.mxu0 0.0
    %513 = vmatpush.msra.mxu0 0.0
    %514 = vmatpush.msra.mxu0 %v79
    %515 = vmatpush.msra.mxu0 %v78
    %516 = vmatpush.msra.mxu0 %v77
    %517 = vmatpush.msra.mxu0 %v76
    %518 = vmatmul.f32.gmra.mxu0 %v500
    %v519 = vpop.f32.mrf.mxu0
    %v520 = vadd.f32 0.0, %v519
    %521 = vdwg.mxu0
    %v523 = vrot.slane %v520, 2
    %v525 = vadd.f32 %v71, %v523
    %v526 = vxor.u32 %v525, 2147483648
    %v527 = vmul.f32 %v526, 1.442695
    %v528 = vpow.pop %v527
    %v529 = vadd.f32 %v528, 1.0
    %v530 = vrcp.pop %v529
    %v531 = vmul.f32 %v529, %v530
    %v532 = vsub.f32 1.0, %v531
    %v533 = vmul.f32 %v530, %v532
    %v534 = vadd.f32 %v530, %v533
    %vm535 = vweird.f32 %v529
    %vm536 = vweird.f32 %v530
    %vm537 = vmor %vm535, %vm536
    %v538 = vsel %vm537, %v530, %v534
    %v539 = vand.u32 2147483647, %v529
    %vm540 = vcmp.eq.f32.partialorder %v539, 8.507059e+37
    %v541 = vand.u32 %v529, 2147483648
    %v542 = vor.u32 1.1754944e-38, %v541
    %v543 = vsel %vm540, %v542, %v538
    %v544 = vmul.f32 1.0, %v543
    %v545 = vtanh.pop %v525
    %v547 = vrot.slane %v419, 6
    %v549 = vmul.f32 %v544, %v547
    %551 = vrot.lane.b32.xlu0 %v545, 64
    %v552 = vpop.permute.xlu0 %551
    %v554 = vmul.f32 %v544, %v552
    %556 = vrot.lane.b32.xlu0 %v554, 32
    %v557 = vpop.permute.xlu0 %556
    %v559 = vadd.f32 %v549, %v557
    %v560 = vtanh.pop %v559
    %562 = vrot.lane.b32.xlu0 %v560, 64
    %v563 = vpop.permute.xlu0 %562
    %v565 = vmul.f32 %v544, %v563
    %567 = vrot.lane.b32.xlu0 %v565, 32
    %v568 = vpop.permute.xlu0 %567
    %v571 = vrot.slane %v496, 2
    %572 = vrot.lane.b32.xlu0 %v571, 64
    %v573 = vpop.permute.xlu0 %572
    %v575 = vsel %vm92, %v568, %v573
    %v577 = vrot.slane %v575, 6
    %v578 = vsel %vm159, %v577, 0
    %580 = vmatpush.msra.mxu0 0.0
    %581 = vmatpush.msra.mxu0 0.0
    %582 = vmatpush.msra.mxu0 0.0
    %583 = vmatpush.msra.mxu0 0.0
    %584 = vmatpush.msra.mxu0 0.0
    %585 = vmatpush.msra.mxu0 0.0
    %586 = vmatpush.msra.mxu0 0.0
    %587 = vmatpush.msra.mxu0 0.0
    %588 = vmatpush.msra.mxu0 %v87
    %589 = vmatpush.msra.mxu0 %v86
    %590 = vmatpush.msra.mxu0 %v85
    %591 = vmatpush.msra.mxu0 %v84
    %592 = vmatpush.msra.mxu0 %v83
    %593 = vmatpush.msra.mxu0 %v82
    %594 = vmatpush.msra.mxu0 %v81
    %595 = vmatpush.msra.mxu0 %v80
    %596 = vmatmul.f32.gmra.mxu0 %v578
    %v597 = vpop.f32.mrf.mxu0
    %v598 = vadd.f32 %v90, %v597
    %599 = vdwg.mxu0
    %v600 = vxor.u32 %v598, 2147483648
    %v601 = vmul.f32 %v600, 1.442695
    %v602 = vpow.pop %v601
    %v603 = vadd.f32 %v602, 1.0
    %v604 = vrcp.pop %v603
    %v605 = vmul.f32 %v603, %v604
    %v606 = vsub.f32 1.0, %v605
    %v607 = vmul.f32 %v604, %v606
    %v608 = vadd.f32 %v604, %v607
    %vm609 = vweird.f32 %v603
    %vm610 = vweird.f32 %v604
    %vm611 = vmor %vm609, %vm610
    %v612 = vsel %vm611, %v604, %v608
    %v613 = vand.u32 2147483647, %v603
    %vm614 = vcmp.eq.f32.partialorder %v613, 8.507059e+37
    %v615 = vand.u32 %v603, 2147483648
    %v616 = vor.u32 1.1754944e-38, %v615
    %v617 = vsel %vm614, %v616, %v612
    %v618 = vmul.f32 1.0, %v617
    %v619 = vtanh.pop %v598
    %v620 = vmul.f32 %v618, %v490
    %622 = vrot.lane.b32.xlu0 %v619, 64
    %v623 = vpop.permute.xlu0 %622
    %v625 = vmul.f32 %v618, %v623
    %627 = vrot.lane.b32.xlu0 %v625, 32
    %v628 = vpop.permute.xlu0 %627
    %v630 = vadd.f32 %v620, %v628
    %v631 = vtanh.pop %v630
    %633 = vrot.lane.b32.xlu0 %v631, 64
    %v634 = vpop.permute.xlu0 %633
    %v636 = vmul.f32 %v618, %v634
    %v637 = vrot.slane %v565, 6
    %638 = vrot.lane.b32.xlu0 %v637, 32
    %v639 = vpop.permute.xlu0 %638
    %v640 = vsel %vm92, %v639, 0
    %642 = vmatpush.msra.mxu0 0.0
    %643 = vmatpush.msra.mxu0 0.0
    %644 = vmatpush.msra.mxu0 0.0
    %645 = vmatpush.msra.mxu0 0.0
    %646 = vmatpush.msra.mxu0 0.0
    %647 = vmatpush.msra.mxu0 0.0
    %648 = vmatpush.msra.mxu0 0.0
    %649 = vmatpush.msra.mxu0 0.0
    %650 = vmatpush.msra.mxu0 0.0
    %651 = vmatpush.msra.mxu0 0.0
    %652 = vmatpush.msra.mxu0 0.0
    %653 = vmatpush.msra.mxu0 0.0
    %654 = vmatpush.msra.mxu0 %v79
    %655 = vmatpush.msra.mxu0 %v78
    %656 = vmatpush.msra.mxu0 %v77
    %657 = vmatpush.msra.mxu0 %v76
    %658 = vmatmul.f32.gmra.mxu0 %v640
    %v659 = vpop.f32.mrf.mxu0
    %v660 = vadd.f32 0.0, %v659
    %661 = vdwg.mxu0
    %v662 = vadd.f32 %v74, %v660
    %v663 = vxor.u32 %v662, 2147483648
    %v664 = vmul.f32 %v663, 1.442695
    %v665 = vpow.pop %v664
    %v666 = vadd.f32 %v665, 1.0
    %v667 = vrcp.pop %v666
    %v668 = vmul.f32 %v666, %v667
    %v669 = vsub.f32 1.0, %v668
    %v670 = vmul.f32 %v667, %v669
    %v671 = vadd.f32 %v667, %v670
    %vm672 = vweird.f32 %v666
    %vm673 = vweird.f32 %v667
    %vm674 = vmor %vm672, %vm673
    %v675 = vsel %vm674, %v667, %v671
    %v676 = vand.u32 2147483647, %v666
    %vm677 = vcmp.eq.f32.partialorder %v676, 8.507059e+37
    %v678 = vand.u32 %v666, 2147483648
    %v679 = vor.u32 1.1754944e-38, %v678
    %v680 = vsel %vm677, %v679, %v675
    %v681 = vmul.f32 1.0, %v680
    %v682 = vtanh.pop %v662
    %v684 = vrot.slane %v559, 6
    %v686 = vmul.f32 %v681, %v684
    %688 = vrot.lane.b32.xlu0 %v682, 64
    %v689 = vpop.permute.xlu0 %688
    %v691 = vmul.f32 %v681, %v689
    %693 = vrot.lane.b32.xlu0 %v691, 32
    %v694 = vpop.permute.xlu0 %693
    %v696 = vadd.f32 %v686, %v694
    %v697 = vtanh.pop %v696
    %699 = vrot.lane.b32.xlu0 %v697, 64
    %v700 = vpop.permute.xlu0 %699
    %v702 = vmul.f32 %v681, %v700
    %704 = vrot.lane.b32.xlu0 %v702, 32
    %v705 = vpop.permute.xlu0 %704
    %708 = vrot.lane.b32.xlu0 %v636, 64
    %v709 = vpop.permute.xlu0 %708
    %v711 = vsel %vm92, %v705, %v709
    %v713 = vsel %vm159, %v711, 0
    %715 = vmatpush.msra.mxu0 0.0
    %716 = vmatpush.msra.mxu0 0.0
    %717 = vmatpush.msra.mxu0 0.0
    %718 = vmatpush.msra.mxu0 0.0
    %719 = vmatpush.msra.mxu0 0.0
    %720 = vmatpush.msra.mxu0 0.0
    %721 = vmatpush.msra.mxu0 0.0
    %722 = vmatpush.msra.mxu0 0.0
    %723 = vmatpush.msra.mxu0 %v87
    %724 = vmatpush.msra.mxu0 %v86
    %725 = vmatpush.msra.mxu0 %v85
    %726 = vmatpush.msra.mxu0 %v84
    %727 = vmatpush.msra.mxu0 %v83
    %728 = vmatpush.msra.mxu0 %v82
    %729 = vmatpush.msra.mxu0 %v81
    %730 = vmatpush.msra.mxu0 %v80
    %731 = vmatmul.f32.gmra.mxu0 %v713
    %v732 = vpop.f32.mrf.mxu0
    %v733 = vadd.f32 %v90, %v732
    %734 = vdwg.mxu0
    %v735 = vxor.u32 %v733, 2147483648
    %v736 = vmul.f32 %v735, 1.442695
    %v737 = vpow.pop %v736
    %v738 = vadd.f32 %v737, 1.0
    %v739 = vrcp.pop %v738
    %v740 = vmul.f32 %v738, %v739
    %v741 = vsub.f32 1.0, %v740
    %v742 = vmul.f32 %v739, %v741
    %v743 = vadd.f32 %v739, %v742
    %vm744 = vweird.f32 %v738
    %vm745 = vweird.f32 %v739
    %vm746 = vmor %vm744, %vm745
    %v747 = vsel %vm746, %v739, %v743
    %v748 = vand.u32 2147483647, %v738
    %vm749 = vcmp.eq.f32.partialorder %v748, 8.507059e+37
    %v750 = vand.u32 %v738, 2147483648
    %v751 = vor.u32 1.1754944e-38, %v750
    %v752 = vsel %vm749, %v751, %v747
    %v753 = vmul.f32 1.0, %v752
    %v754 = vtanh.pop %v733
    %v755 = vmul.f32 %v753, %v630
    %757 = vrot.lane.b32.xlu0 %v754, 64
    %v758 = vpop.permute.xlu0 %757
    %v760 = vmul.f32 %v753, %v758
    %762 = vrot.lane.b32.xlu0 %v760, 32
    %v763 = vpop.permute.xlu0 %762
    %v765 = vadd.f32 %v755, %v763
    %v766 = vtanh.pop %v765
    %768 = vrot.lane.b32.xlu0 %v766, 64
    %v769 = vpop.permute.xlu0 %768
    %v771 = vmul.f32 %v753, %v769
    %v772 = vsel %vm92, %v705, 0
    %774 = vmatpush.msra.mxu0 0.0
    %775 = vmatpush.msra.mxu0 0.0
    %776 = vmatpush.msra.mxu0 0.0
    %777 = vmatpush.msra.mxu0 0.0
    %778 = vmatpush.msra.mxu0 0.0
    %779 = vmatpush.msra.mxu0 0.0
    %780 = vmatpush.msra.mxu0 0.0
    %781 = vmatpush.msra.mxu0 0.0
    %782 = vmatpush.msra.mxu0 0.0
    %783 = vmatpush.msra.mxu0 0.0
    %784 = vmatpush.msra.mxu0 0.0
    %785 = vmatpush.msra.mxu0 0.0
    %786 = vmatpush.msra.mxu0 %v79
    %787 = vmatpush.msra.mxu0 %v78
    %788 = vmatpush.msra.mxu0 %v77
    %789 = vmatpush.msra.mxu0 %v76
    %790 = vmatmul.f32.gmra.mxu0 %v772
    %v791 = vpop.f32.mrf.mxu0
    %v792 = vadd.f32 0.0, %v791
    %793 = vdwg.mxu0
    %v795 = vrot.slane %v792, 6
    %v797 = vadd.f32 %v74, %v795
    %v798 = vxor.u32 %v797, 2147483648
    %v799 = vmul.f32 %v798, 1.442695
    %v800 = vpow.pop %v799
    %v801 = vadd.f32 %v800, 1.0
    %v802 = vrcp.pop %v801
    %v803 = vmul.f32 %v801, %v802
    %v804 = vsub.f32 1.0, %v803
    %v805 = vmul.f32 %v802, %v804
    %v806 = vadd.f32 %v802, %v805
    %vm807 = vweird.f32 %v801
    %vm808 = vweird.f32 %v802
    %vm809 = vmor %vm807, %vm808
    %v810 = vsel %vm809, %v802, %v806
    %v811 = vand.u32 2147483647, %v801
    %vm812 = vcmp.eq.f32.partialorder %v811, 8.507059e+37
    %v813 = vand.u32 %v801, 2147483648
    %v814 = vor.u32 1.1754944e-38, %v813
    %v815 = vsel %vm812, %v814, %v810
    %v816 = vmul.f32 1.0, %v815
    %v817 = vtanh.pop %v797
    %v819 = vrot.slane %v696, 6
    %v821 = vmul.f32 %v816, %v819
    %823 = vrot.lane.b32.xlu0 %v817, 64
    %v824 = vpop.permute.xlu0 %823
    %v826 = vmul.f32 %v816, %v824
    %828 = vrot.lane.b32.xlu0 %v826, 32
    %v829 = vpop.permute.xlu0 %828
    %v831 = vadd.f32 %v821, %v829
    %v832 = vtanh.pop %v831
    %834 = vrot.lane.b32.xlu0 %v832, 64
    %v835 = vpop.permute.xlu0 %834
    %v837 = vmul.f32 %v816, %v835
    %839 = vrot.lane.b32.xlu0 %v837, 32
    %v840 = vpop.permute.xlu0 %839
    %v843 = vrot.slane %v771, 6
    %844 = vrot.lane.b32.xlu0 %v843, 64
    %v845 = vpop.permute.xlu0 %844
    %v847 = vsel %vm92, %v840, %v845
    %v849 = vrot.slane %v847, 2
    %v850 = vsel %vm159, %v849, 0
    %852 = vmatpush.msra.mxu0 0.0
    %853 = vmatpush.msra.mxu0 0.0
    %854 = vmatpush.msra.mxu0 0.0
    %855 = vmatpush.msra.mxu0 0.0
    %856 = vmatpush.msra.mxu0 0.0
    %857 = vmatpush.msra.mxu0 0.0
    %858 = vmatpush.msra.mxu0 0.0
    %859 = vmatpush.msra.mxu0 0.0
    %860 = vmatpush.msra.mxu0 %v87
    %861 = vmatpush.msra.mxu0 %v86
    %862 = vmatpush.msra.mxu0 %v85
    %863 = vmatpush.msra.mxu0 %v84
    %864 = vmatpush.msra.mxu0 %v83
    %865 = vmatpush.msra.mxu0 %v82
    %866 = vmatpush.msra.mxu0 %v81
    %867 = vmatpush.msra.mxu0 %v80
    %868 = vmatmul.f32.gmra.mxu0 %v850
    %v869 = vpop.f32.mrf.mxu0
    %v870 = vadd.f32 %v90, %v869
    %871 = vdwg.mxu0
    %v872 = vxor.u32 %v870, 2147483648
    %v873 = vmul.f32 %v872, 1.442695
    %v874 = vpow.pop %v873
    %v875 = vadd.f32 %v874, 1.0
    %v876 = vrcp.pop %v875
    %v877 = vmul.f32 %v875, %v876
    %v878 = vsub.f32 1.0, %v877
    %v879 = vmul.f32 %v876, %v878
    %v880 = vadd.f32 %v876, %v879
    %vm881 = vweird.f32 %v875
    %vm882 = vweird.f32 %v876
    %vm883 = vmor %vm881, %vm882
    %v884 = vsel %vm883, %v876, %v880
    %v885 = vand.u32 2147483647, %v875
    %vm886 = vcmp.eq.f32.partialorder %v885, 8.507059e+37
    %v887 = vand.u32 %v875, 2147483648
    %v888 = vor.u32 1.1754944e-38, %v887
    %v889 = vsel %vm886, %v888, %v884
    %v890 = vmul.f32 1.0, %v889
    %v891 = vtanh.pop %v870
    %v892 = vmul.f32 %v890, %v765
    %894 = vrot.lane.b32.xlu0 %v891, 64
    %v895 = vpop.permute.xlu0 %894
    %v897 = vmul.f32 %v890, %v895
    %899 = vrot.lane.b32.xlu0 %v897, 32
    %v900 = vpop.permute.xlu0 %899
    %v902 = vadd.f32 %v892, %v900
    %v903 = vtanh.pop %v902
    %905 = vrot.lane.b32.xlu0 %v903, 64
    %v906 = vpop.permute.xlu0 %905
    %v908 = vmul.f32 %v890, %v906
    %v909 = vrot.slane %v837, 2
    %910 = vrot.lane.b32.xlu0 %v909, 32
    %v911 = vpop.permute.xlu0 %910
    %v912 = vsel %vm92, %v911, 0
    %914 = vmatpush.msra.mxu0 0.0
    %915 = vmatpush.msra.mxu0 0.0
    %916 = vmatpush.msra.mxu0 0.0
    %917 = vmatpush.msra.mxu0 0.0
    %918 = vmatpush.msra.mxu0 0.0
    %919 = vmatpush.msra.mxu0 0.0
    %920 = vmatpush.msra.mxu0 0.0
    %921 = vmatpush.msra.mxu0 0.0
    %922 = vmatpush.msra.mxu0 0.0
    %923 = vmatpush.msra.mxu0 0.0
    %924 = vmatpush.msra.mxu0 0.0
    %925 = vmatpush.msra.mxu0 0.0
    %926 = vmatpush.msra.mxu0 %v79
    %927 = vmatpush.msra.mxu0 %v78
    %928 = vmatpush.msra.mxu0 %v77
    %929 = vmatpush.msra.mxu0 %v76
    %930 = vmatmul.f32.gmra.mxu0 %v912
    %v931 = vpop.f32.mrf.mxu0
    %v932 = vadd.f32 0.0, %v931
    %933 = vdwg.mxu0
    %v935 = vrot.slane %v932, 4
    %v937 = vadd.f32 %v74, %v935
    %v938 = vxor.u32 %v937, 2147483648
    %v939 = vmul.f32 %v938, 1.442695
    %v940 = vpow.pop %v939
    %v941 = vadd.f32 %v940, 1.0
    %v942 = vrcp.pop %v941
    %v943 = vmul.f32 %v941, %v942
    %v944 = vsub.f32 1.0, %v943
    %v945 = vmul.f32 %v942, %v944
    %v946 = vadd.f32 %v942, %v945
    %vm947 = vweird.f32 %v941
    %vm948 = vweird.f32 %v942
    %vm949 = vmor %vm947, %vm948
    %v950 = vsel %vm949, %v942, %v946
    %v951 = vand.u32 2147483647, %v941
    %vm952 = vcmp.eq.f32.partialorder %v951, 8.507059e+37
    %v953 = vand.u32 %v941, 2147483648
    %v954 = vor.u32 1.1754944e-38, %v953
    %v955 = vsel %vm952, %v954, %v950
    %v956 = vmul.f32 1.0, %v955
    %v957 = vtanh.pop %v937
    %v959 = vrot.slane %v831, 6
    %v961 = vmul.f32 %v956, %v959
    %963 = vrot.lane.b32.xlu0 %v957, 64
    %v964 = vpop.permute.xlu0 %963
    %v966 = vmul.f32 %v956, %v964
    %968 = vrot.lane.b32.xlu0 %v966, 32
    %v969 = vpop.permute.xlu0 %968
    %v971 = vadd.f32 %v961, %v969
    %v972 = vtanh.pop %v971
    %974 = vrot.lane.b32.xlu0 %v972, 64
    %v975 = vpop.permute.xlu0 %974
    %v977 = vmul.f32 %v956, %v975
    %979 = vrot.lane.b32.xlu0 %v977, 32
    %v980 = vpop.permute.xlu0 %979
    %v983 = vrot.slane %v908, 4
    %984 = vrot.lane.b32.xlu0 %v983, 64
    %v985 = vpop.permute.xlu0 %984
    %v987 = vsel %vm92, %v980, %v985
    %v989 = vrot.slane %v987, 4
    %v990 = vsel %vm159, %v989, 0
    %992 = vmatpush.msra.mxu0 0.0
    %993 = vmatpush.msra.mxu0 0.0
    %994 = vmatpush.msra.mxu0 0.0
    %995 = vmatpush.msra.mxu0 0.0
    %996 = vmatpush.msra.mxu0 0.0
    %997 = vmatpush.msra.mxu0 0.0
    %998 = vmatpush.msra.mxu0 0.0
    %999 = vmatpush.msra.mxu0 0.0
    %1000 = vmatpush.msra.mxu0 %v87
    %1001 = vmatpush.msra.mxu0 %v86
    %1002 = vmatpush.msra.mxu0 %v85
    %1003 = vmatpush.msra.mxu0 %v84
    %1004 = vmatpush.msra.mxu0 %v83
    %1005 = vmatpush.msra.mxu0 %v82
    %1006 = vmatpush.msra.mxu0 %v81
    %1007 = vmatpush.msra.mxu0 %v80
    %1008 = vmatmul.f32.gmra.mxu0 %v990
    %v1009 = vpop.f32.mrf.mxu0
    %v1010 = vadd.f32 %v90, %v1009
    %1011 = vdwg.mxu0
    %v1012 = vxor.u32 %v1010, 2147483648
    %v1013 = vmul.f32 %v1012, 1.442695
    %v1014 = vpow.pop %v1013
    %v1015 = vadd.f32 %v1014, 1.0
    %v1016 = vrcp.pop %v1015
    %v1017 = vmul.f32 %v1015, %v1016
    %v1018 = vsub.f32 1.0, %v1017
    %v1019 = vmul.f32 %v1016, %v1018
    %v1020 = vadd.f32 %v1016, %v1019
    %vm1021 = vweird.f32 %v1015
    %vm1022 = vweird.f32 %v1016
    %vm1023 = vmor %vm1021, %vm1022
    %v1024 = vsel %vm1023, %v1016, %v1020
    %v1025 = vand.u32 2147483647, %v1015
    %vm1026 = vcmp.eq.f32.partialorder %v1025, 8.507059e+37
    %v1027 = vand.u32 %v1015, 2147483648
    %v1028 = vor.u32 1.1754944e-38, %v1027
    %v1029 = vsel %vm1026, %v1028, %v1024
    %v1030 = vmul.f32 1.0, %v1029
    %v1031 = vtanh.pop %v1010
    %v1032 = vmul.f32 %v1030, %v902
    %1034 = vrot.lane.b32.xlu0 %v1031, 64
    %v1035 = vpop.permute.xlu0 %1034
    %v1037 = vmul.f32 %v1030, %v1035
    %1039 = vrot.lane.b32.xlu0 %v1037, 32
    %v1040 = vpop.permute.xlu0 %1039
    %v1042 = vadd.f32 %v1032, %v1040
    %v1043 = vtanh.pop %v1042
    %1045 = vrot.lane.b32.xlu0 %v1043, 64
    %v1046 = vpop.permute.xlu0 %1045
    %v1048 = vmul.f32 %v1030, %v1046
    %v1049 = vrot.slane %v977, 4
    %1050 = vrot.lane.b32.xlu0 %v1049, 32
    %v1051 = vpop.permute.xlu0 %1050
    %v1052 = vsel %vm92, %v1051, 0
    %1054 = vmatpush.msra.mxu0 0.0
    %1055 = vmatpush.msra.mxu0 0.0
    %1056 = vmatpush.msra.mxu0 0.0
    %1057 = vmatpush.msra.mxu0 0.0
    %1058 = vmatpush.msra.mxu0 0.0
    %1059 = vmatpush.msra.mxu0 0.0
    %1060 = vmatpush.msra.mxu0 0.0
    %1061 = vmatpush.msra.mxu0 0.0
    %1062 = vmatpush.msra.mxu0 0.0
    %1063 = vmatpush.msra.mxu0 0.0
    %1064 = vmatpush.msra.mxu0 0.0
    %1065 = vmatpush.msra.mxu0 0.0
    %1066 = vmatpush.msra.mxu0 %v79
    %1067 = vmatpush.msra.mxu0 %v78
    %1068 = vmatpush.msra.mxu0 %v77
    %1069 = vmatpush.msra.mxu0 %v76
    %1070 = vmatmul.f32.gmra.mxu0 %v1052
    %v1071 = vpop.f32.mrf.mxu0
    %v1072 = vadd.f32 0.0, %v1071
    %1073 = vdwg.mxu0
    %v1075 = vrot.slane %v1072, 2
    %v1077 = vadd.f32 %v74, %v1075
    %v1078 = vxor.u32 %v1077, 2147483648
    %v1079 = vmul.f32 %v1078, 1.442695
    %v1080 = vpow.pop %v1079
    %v1081 = vadd.f32 %v1080, 1.0
    %v1082 = vrcp.pop %v1081
    %v1083 = vmul.f32 %v1081, %v1082
    %v1084 = vsub.f32 1.0, %v1083
    %v1085 = vmul.f32 %v1082, %v1084
    %v1086 = vadd.f32 %v1082, %v1085
    %vm1087 = vweird.f32 %v1081
    %vm1088 = vweird.f32 %v1082
    %vm1089 = vmor %vm1087, %vm1088
    %v1090 = vsel %vm1089, %v1082, %v1086
    %v1091 = vand.u32 2147483647, %v1081
    %vm1092 = vcmp.eq.f32.partialorder %v1091, 8.507059e+37
    %v1093 = vand.u32 %v1081, 2147483648
    %v1094 = vor.u32 1.1754944e-38, %v1093
    %v1095 = vsel %vm1092, %v1094, %v1090
    %v1096 = vmul.f32 1.0, %v1095
    %v1097 = vtanh.pop %v1077
    %v1099 = vrot.slane %v971, 6
    %v1101 = vmul.f32 %v1096, %v1099
    %1103 = vrot.lane.b32.xlu0 %v1097, 64
    %v1104 = vpop.permute.xlu0 %1103
    %v1106 = vmul.f32 %v1096, %v1104
    %1108 = vrot.lane.b32.xlu0 %v1106, 32
    %v1109 = vpop.permute.xlu0 %1108
    %v1111 = vadd.f32 %v1101, %v1109
    %v1112 = vtanh.pop %v1111
    %1114 = vrot.lane.b32.xlu0 %v1112, 64
    %v1115 = vpop.permute.xlu0 %1114
    %v1117 = vmul.f32 %v1096, %v1115
    %1119 = vrot.lane.b32.xlu0 %v1117, 32
    %v1120 = vpop.permute.xlu0 %1119
    %v1123 = vrot.slane %v1048, 2
    %1124 = vrot.lane.b32.xlu0 %v1123, 64
    %v1125 = vpop.permute.xlu0 %1124
    %v1127 = vsel %vm92, %v1120, %v1125
    %v1129 = vrot.slane %v1127, 6
    %v1130 = vsel %vm159, %v1129, 0
    %1132 = vmatpush.msra.mxu0 0.0
    %1133 = vmatpush.msra.mxu0 0.0
    %1134 = vmatpush.msra.mxu0 0.0
    %1135 = vmatpush.msra.mxu0 0.0
    %1136 = vmatpush.msra.mxu0 0.0
    %1137 = vmatpush.msra.mxu0 0.0
    %1138 = vmatpush.msra.mxu0 0.0
    %1139 = vmatpush.msra.mxu0 0.0
    %1140 = vmatpush.msra.mxu0 %v87
    %1141 = vmatpush.msra.mxu0 %v86
    %1142 = vmatpush.msra.mxu0 %v85
    %1143 = vmatpush.msra.mxu0 %v84
    %1144 = vmatpush.msra.mxu0 %v83
    %1145 = vmatpush.msra.mxu0 %v82
    %1146 = vmatpush.msra.mxu0 %v81
    %1147 = vmatpush.msra.mxu0 %v80
    %1148 = vmatmul.f32.gmra.mxu0 %v1130
    %v1149 = vpop.f32.mrf.mxu0
    %v1150 = vadd.f32 %v90, %v1149
    %1151 = vdwg.mxu0
    %v1152 = vxor.u32 %v1150, 2147483648
    %v1153 = vmul.f32 %v1152, 1.442695
    %v1154 = vpow.pop %v1153
    %v1155 = vadd.f32 %v1154, 1.0
    %v1156 = vrcp.pop %v1155
    %v1157 = vmul.f32 %v1155, %v1156
    %v1158 = vsub.f32 1.0, %v1157
    %v1159 = vmul.f32 %v1156, %v1158
    %v1160 = vadd.f32 %v1156, %v1159
    %vm1161 = vweird.f32 %v1155
    %vm1162 = vweird.f32 %v1156
    %vm1163 = vmor %vm1161, %vm1162
    %v1164 = vsel %vm1163, %v1156, %v1160
    %v1165 = vand.u32 2147483647, %v1155
    %vm1166 = vcmp.eq.f32.partialorder %v1165, 8.507059e+37
    %v1167 = vand.u32 %v1155, 2147483648
    %v1168 = vor.u32 1.1754944e-38, %v1167
    %v1169 = vsel %vm1166, %v1168, %v1164
    %v1170 = vmul.f32 1.0, %v1169
    %v1171 = vtanh.pop %v1150
    %v1172 = vmul.f32 %v1170, %v1042
    %1174 = vrot.lane.b32.xlu0 %v1171, 64
    %v1175 = vpop.permute.xlu0 %1174
    %v1177 = vmul.f32 %v1170, %v1175
    %1179 = vrot.lane.b32.xlu0 %v1177, 32
    %v1180 = vpop.permute.xlu0 %1179
    %v1182 = vadd.f32 %v1172, %v1180
    %v1183 = vtanh.pop %v1182
    %1185 = vrot.lane.b32.xlu0 %v1183, 64
    %v1186 = vpop.permute.xlu0 %1185
    %v1188 = vmul.f32 %v1170, %v1186
    %1189 = vrot.lane.b32.xlu0 %v219, 32
    %v1190 = vpop.permute.xlu0 %1189
    %1192 = vrot.lane.b32.xlu0 %v356, 64
    %v1193 = vpop.permute.xlu0 %1192
    %1195 = vrot.lane.b32.xlu0 %v496, 96
    %v1196 = vpop.permute.xlu0 %1195
    %1198 = vrot.lane.b32.xlu0 %v771, 32
    %v1199 = vpop.permute.xlu0 %1198
    %1201 = vrot.lane.b32.xlu0 %v908, 64
    %v1202 = vpop.permute.xlu0 %1201
    %1204 = vrot.lane.b32.xlu0 %v1048, 96
    %v1205 = vpop.permute.xlu0 %1204
    %v1207 = vsel %vm92, %v1190, %v1193
    %v1208 = vsel %vm159, %v1207, %v1196
    %vm1209 = vcmask 785408
    %v1210 = vsel %vm1209, %v1208, %v636
    %v1211 = vsel %vm92, %v1199, %v1202
    %v1212 = vsel %vm159, %v1211, %v1205
    %v1213 = vsel %vm1209, %v1212, %v1188
    %v1214 = vld [vmem:[%s7] sm:$0xff]
    %v1215 = vld [vmem:[%s7 + $0x8] sm:$0xff]
    %v1216 = vld [vmem:[%s7 + $0x10] sm:$0xff]
    %v1217 = vld [vmem:[%s7 + $0x18] sm:$0xff]
    %v1218 = vld [vmem:[%s7 + $0x20] sm:$0xff]
    %v1219 = vld [vmem:[%s7 + $0x28] sm:$0xff]
    %v1220 = vld [vmem:[%s7 + $0x30] sm:$0xff]
    %v1221 = vld [vmem:[%s7 + $0x38] sm:$0xff]
    %v1222 = vld [vmem:[%s7 + $0x40] sm:$0xff]
    %v1223 = vld [vmem:[%s7 + $0x48] sm:$0xff]
    %v1224 = vld [vmem:[%s7 + $0x50] sm:$0xff]
    %v1225 = vld [vmem:[%s7 + $0x58] sm:$0xff]
    %v1226 = vld [vmem:[%s7 + $0x60] sm:$0xff]
    %v1227 = vld [vmem:[%s7 + $0x68] sm:$0xff]
    %v1228 = vld [vmem:[%s7 + $0x70] sm:$0xff]
    %v1229 = vld [vmem:[%s7 + $0x78] sm:$0xff]
    %v1230 = vld [vmem:[%s7 + $0x80] sm:$0xff]
    %v1231 = vld [vmem:[%s7 + $0x88] sm:$0xff]
    %v1232 = vld [vmem:[%s7 + $0x90] sm:$0xff]
    %v1233 = vld [vmem:[%s7 + $0x98] sm:$0xff]
    %v1234 = vld [vmem:[%s7 + $0xa0] sm:$0xff]
    %v1235 = vld [vmem:[%s7 + $0xa8] sm:$0xff]
    %v1236 = vld [vmem:[%s7 + $0xb0] sm:$0xff]
    %v1237 = vld [vmem:[%s7 + $0xb8] sm:$0xff]
    %v1238 = vld [vmem:[%s7 + $0xc0] sm:$0xff]
    %v1239 = vld [vmem:[%s7 + $0xc8] sm:$0xff]
    %v1240 = vld [vmem:[%s7 + $0xd0] sm:$0xff]
    %v1241 = vld [vmem:[%s7 + $0xd8] sm:$0xff]
    %v1242 = vld [vmem:[%s7 + $0xe0] sm:$0xff]
    %v1243 = vld [vmem:[%s7 + $0xe8] sm:$0xff]
    %v1244 = vld [vmem:[%s7 + $0xf0] sm:$0xff]
    %v1245 = vld [vmem:[%s7 + $0xf8] sm:$0xff]
    %v1246 = vld [vmem:[%s8] sm:$0x1]
    %v1248 = vperm.slane %v1246, 0
    %1250 = vmatpush.msra.mxu0 %v1229
    %1251 = vmatpush.msra.mxu0 %v1228
    %1252 = vmatpush.msra.mxu0 %v1227
    %1253 = vmatpush.msra.mxu0 %v1226
    %1254 = vmatpush.msra.mxu0 %v1225
    %1255 = vmatpush.msra.mxu0 %v1224
    %1256 = vmatpush.msra.mxu0 %v1223
    %1257 = vmatpush.msra.mxu0 %v1222
    %1258 = vmatpush.msra.mxu0 %v1221
    %1259 = vmatpush.msra.mxu0 %v1220
    %1260 = vmatpush.msra.mxu0 %v1219
    %1261 = vmatpush.msra.mxu0 %v1218
    %1262 = vmatpush.msra.mxu0 %v1217
    %1263 = vmatpush.msra.mxu0 %v1216
    %1264 = vmatpush.msra.mxu0 %v1215
    %1265 = vmatpush.msra.mxu0 %v1214
    %1266 = vmatmul.f32.gmra.mxu0 %v1210
    %v1267 = vpop.f32.mrf.mxu0
    %v1268 = vadd.f32 %v1248, %v1267
    %1269 = vdwg.mxu0
    %1270 = vmatpush.msra.mxu0 %v1245
    %1271 = vmatpush.msra.mxu0 %v1244
    %1272 = vmatpush.msra.mxu0 %v1243
    %1273 = vmatpush.msra.mxu0 %v1242
    %1274 = vmatpush.msra.mxu0 %v1241
    %1275 = vmatpush.msra.mxu0 %v1240
    %1276 = vmatpush.msra.mxu0 %v1239
    %1277 = vmatpush.msra.mxu0 %v1238
    %1278 = vmatpush.msra.mxu0 %v1237
    %1279 = vmatpush.msra.mxu0 %v1236
    %1280 = vmatpush.msra.mxu0 %v1235
    %1281 = vmatpush.msra.mxu0 %v1234
    %1282 = vmatpush.msra.mxu0 %v1233
    %1283 = vmatpush.msra.mxu0 %v1232
    %1284 = vmatpush.msra.mxu0 %v1231
    %1285 = vmatpush.msra.mxu0 %v1230
    %1286 = vmatmul.f32.gmra.mxu0 %v1213
    %v1287 = vpop.f32.mrf.mxu0
    %v1288 = vadd.f32 %v1268, %v1287
    %1289 = vdwg.mxu0
    %v1290 = vmax.f32 %v1288, 0.0
    %v1291 = vld [vmem:[%s1] sm:$0x3]
    %1293 = vrot.lane.b32.xlu0 %v1291, 32
    %v1294 = vpop.permute.xlu0 %1293
    %v1296 = vsel %vm92, %v1290, %v1294
    %v1297 = vld [vmem:[%s9] sm:$0xff]
    %v1298 = vld [vmem:[%s9 + $0x8] sm:$0xff]
    %v1299 = vld [vmem:[%s9 + $0x10] sm:$0xff]
    %v1300 = vld [vmem:[%s9 + $0x18] sm:$0xff]
    %v1301 = vld [vmem:[%s9 + $0x20] sm:$0x1]
    %v1302 = vld [vmem:[%s10] sm:$0x1]
    %v1304 = vperm.slane %v1302, 0
    %vm1306 = vcmask 269312
    %v1308 = vsel %vm1306, %v1296, 0
    %vm1310 = vcmask 1040384
    %v1312 = vsel %vm1310, %v1301, 0
    %1314 = vmatpush.msra.mxu0 0.0
    %1315 = vmatpush.msra.mxu0 0.0
    %1316 = vmatpush.msra.mxu0 0.0
    %1317 = vmatpush.msra.mxu0 0.0
    %1318 = vmatpush.msra.mxu0 0.0
    %1319 = vmatpush.msra.mxu0 0.0
    %1320 = vmatpush.msra.mxu0 0.0
    %1321 = vmatpush.msra.mxu0 0.0
    %1322 = vmatpush.msra.mxu0 0.0
    %1323 = vmatpush.msra.mxu0 0.0
    %1324 = vmatpush.msra.mxu0 0.0
    %1325 = vmatpush.msra.mxu0 %v1312
    %1326 = vmatpush.msra.mxu0 %v1300
    %1327 = vmatpush.msra.mxu0 %v1299
    %1328 = vmatpush.msra.mxu0 %v1298
    %1329 = vmatpush.msra.mxu0 %v1297
    %1330 = vmatmul.f32.gmra.mxu0 %v1308
    %v1331 = vpop.f32.mrf.mxu0
    %v1332 = vadd.f32 %v1304, %v1331
    %1333 = vdwg.mxu0
    %vm1334 = vcmask 254976
    %1335 = vst.msk [vmem:[#allocation2] sm:$0x3] %vm1334, %v1332
    // Predicated region
    $region46: #{tpu_custom_call.1} parent=1 // pred_check
      _
    $region47: #{tpu_custom_call.1} parent=1 // pred_check_branch
      %1337 = sbr.rel (0) target = $region49
    $region48: #{tpu_custom_call.1} parent=1 // pred_region
      %1339 = vsyncadd [#allocation3], 0
      %s1341 = sshll.u32 [#allocation2], 4
      %s1342 = int_to_ptr.vmem [resolvable:$true] %s1341
      %s1343 = sshll.u32 %s11, 4
      %s1344 = int_to_ptr.hbm [resolvable:$true] %s1343
      %1346 = dma.vmem_to_hbm [thread:$0]  %s1342, 32, %s1344, [#allocation3]
    $region49: #{tpu_custom_call.1} parent=1 // pred_fallthru
      _
    // Predicated region
    $region50: #{tpu_custom_call.1} parent=1 // pred_check
      _
    $region51: #{tpu_custom_call.1} parent=1 // pred_check_branch
      %1348 = sbr.rel (0) target = $region53
    $region52: #{tpu_custom_call.1} parent=1 // pred_region
      %1350 = dma.done [#allocation3], 32
    $region53: #{tpu_custom_call.1} parent=1 // pred_fallthru
      _
    %1351 = vsyncpa [#allocation3], 1

</llo_original>
